<compile_context>
chip_gen: v5e
topology: v5e:2x2
jax: 0.10.0
libtpu: 0.0.40
codegen_flags: <defaults>
</compile_context>

<pallas_src>
import math
from functools import partial

import jax
import jax.numpy as jnp
from jax import lax
from jax.experimental import pallas as pl
from jax.experimental.pallas import tpu as pltpu


# ---------------------------------------------------------------------------
# Configuration (small shapes)
# ---------------------------------------------------------------------------
B = 2                 # batch
IMG_C = 3             # input image channels
H = W = 16            # spatial
BACKBONE_C = 4        # backbone.num_channels
HIDDEN = 32           # transformer.d_model
NUM_QUERIES = 8
NUM_OBJ_CLASSES = 7   # -> obj head outputs NUM_OBJ_CLASSES + 1 = 8
NUM_VERB_CLASSES = 8
NUM_DEC_LAYERS = 2    # "L" in hs (stand-in transformer depth)
HW = H * W

C_OBJ = NUM_OBJ_CLASSES + 1         # 8
C_VERB = NUM_VERB_CLASSES           # 8
C_CLS = C_OBJ + C_VERB              # 16
C_HEADS = C_CLS + 4 + 4             # 24 : [obj | verb | sub_box | obj_box]


# ---------------------------------------------------------------------------
# Fused Pallas kernel: folded 1x1 conv -> decoder stand-in -> all heads
# ---------------------------------------------------------------------------
def _fused_kernel(x_ref, pos_ref, wf_ref, bf_ref, qe_ref,
                  wc1_ref, bc1_ref, wc2_ref, bc2_ref, wc3_ref, bc3_ref,
                  o_ref):
    """One batch element per grid step.

    x_ref  : (1, HW, IMG_C)   image pixels, channels-last, flattened spatially
    pos_ref: (1, HW, HIDDEN)  sine positional embedding
    wf_ref : (IMG_C, HIDDEN)  folded backbone-conv @ input_proj weight
    bf_ref : (1, HIDDEN)      folded bias
    qe_ref : (Q, HIDDEN)      query_embed.weight
    wc1/bc1: (HIDDEN, 80)/(1,80)   [obj_w | verb_w | sub_w1 | objb_w1]
    wc2/bc2: (64, 64)/(1,64)       blockdiag(sub_w2, objb_w2)
    wc3/bc3: (64, 8)/(1,8)         blockdiag(sub_w3, objb_w3)
    o_ref  : (L, 1, Q, 24)    [obj_logits(8) | verb_logits(8) | sub(4) | obj(4)]
    """
    x = x_ref[0]              # (HW, IMG_C)
    pos = pos_ref[0]          # (HW, d)

    # ---- folded backbone + input_proj 1x1 conv: tiny-K contraction as FMAs
    mem = bf_ref[...]                                      # (1, d) -> broadcast
    for k in range(IMG_C):                                 # unrolled, K=3
        mem = mem + x[:, k:k + 1] * wf_ref[k:k + 1, :]     # (HW, d)

    # ---- DETR-style cross-attention decoder stand-in -----------------------
    # TODO(synk): the real DETR transformer (self-attn, FFN, layernorm, mask
    # handling) is an external injected module; this is a deterministic
    # cross-attention stand-in with matching interface/shapes.
    keys = mem + pos                                       # keys carry pos enc
    qe = qe_ref[...]                                       # (Q, d)
    scale = 1.0 / math.sqrt(HIDDEN)

    tgt = jnp.zeros((NUM_QUERIES, HIDDEN), jnp.float32)
    hs_layers = []
    for _ in range(NUM_DEC_LAYERS):
        q = tgt + qe
        scores = lax.dot_general(
            q, keys, (((1,), (1,)), ((), ())),
            preferred_element_type=jnp.float32) * scale    # (Q, HW)
        attn = jax.nn.softmax(scores, axis=-1)
        tgt = tgt + jnp.dot(attn, mem, preferred_element_type=jnp.float32)
        hs_layers.append(tgt)

    h = jnp.concatenate(hs_layers, axis=0)                 # (L*Q, d)

    # ---- fused prediction heads (3 lane-dense matmuls) ----------------------
    z1 = jnp.dot(h, wc1_ref[...], preferred_element_type=jnp.float32) \
        + bc1_ref[...]                                     # (L*Q, 80)
    cls_logits = z1[:, :C_CLS]                             # [obj | verb]
    x12 = jnp.maximum(z1[:, C_CLS:], 0.0)                  # [sub_h1 | obj_h1]
    z2 = jnp.maximum(
        jnp.dot(x12, wc2_ref[...], preferred_element_type=jnp.float32)
        + bc2_ref[...], 0.0)                               # (L*Q, 64)
    z3 = jnp.dot(z2, wc3_ref[...], preferred_element_type=jnp.float32) \
        + bc3_ref[...]                                     # (L*Q, 8)
    boxes = jax.nn.sigmoid(z3)                             # [sub_box | obj_box]

    slab = jnp.concatenate([cls_logits, boxes], axis=-1)   # (L*Q, 24)
    for l in range(NUM_DEC_LAYERS):
        o_ref[l, 0, :, :] = slab[l * NUM_QUERIES:(l + 1) * NUM_QUERIES, :]


def pallas_fused_forward(x_nhwc, fp):
    """x_nhwc: (B, HW, IMG_C); fp: fused params.  Returns (L, B, Q, 24)."""
    def full_spec(arr):
        shape = arr.shape
        return pl.BlockSpec(shape, lambda b, _s=shape: (0,) * len(_s))

    return pl.pallas_call(
        _fused_kernel,
        out_shape=jax.ShapeDtypeStruct(
            (NUM_DEC_LAYERS, B, NUM_QUERIES, C_HEADS), jnp.float32),
        grid=(B,),
        in_specs=[
            pl.BlockSpec((1, HW, IMG_C), lambda b: (b, 0, 0)),
            pl.BlockSpec((1, HW, HIDDEN), lambda b: (b, 0, 0)),
            full_spec(fp["wf"]),
            full_spec(fp["bf"]),
            full_spec(fp["query_embed"]),
            full_spec(fp["wc1"]),
            full_spec(fp["bc1"]),
            full_spec(fp["wc2"]),
            full_spec(fp["bc2"]),
            full_spec(fp["wc3"]),
            full_spec(fp["bc3"]),
        ],
        out_specs=pl.BlockSpec(
            (NUM_DEC_LAYERS, 1, NUM_QUERIES, C_HEADS),
            lambda b: (0, b, 0, 0)),
        compiler_params=pltpu.CompilerParams(
            dimension_semantics=("parallel",),      # v7x: shard B over 2 TCs
            vmem_limit_bytes=16 * 1024 * 1024),
    )(x_nhwc, fp["pos"], fp["wf"], fp["bf"], fp["query_embed"],
      fp["wc1"], fp["bc1"], fp["wc2"], fp["bc2"], fp["wc3"], fp["bc3"])


# ---------------------------------------------------------------------------
# Sine positional embedding (matches DETR PositionEmbeddingSine); mask is a
# shape-only constant here (no padding), so this is computed once on host.
# ---------------------------------------------------------------------------
def sine_pos_embed(mask, hidden_dim):
    not_mask = (~mask).astype(jnp.float32)
    y_embed = jnp.cumsum(not_mask, axis=1)
    x_embed = jnp.cumsum(not_mask, axis=2)
    eps = 1e-6
    scale = 2.0 * math.pi
    y_embed = y_embed / (y_embed[:, -1:, :] + eps) * scale
    x_embed = x_embed / (x_embed[:, :, -1:] + eps) * scale

    num_pos_feats = hidden_dim // 2
    dim_t = jnp.arange(num_pos_feats, dtype=jnp.float32)
    dim_t = 10000.0 ** (2.0 * jnp.floor(dim_t / 2.0) / num_pos_feats)

    pos_x = x_embed[..., None] / dim_t
    pos_y = y_embed[..., None] / dim_t
    pos_x = jnp.stack(
        [jnp.sin(pos_x[..., 0::2]), jnp.cos(pos_x[..., 1::2])], axis=4
    ).reshape(*pos_x.shape[:3], -1)
    pos_y = jnp.stack(
        [jnp.sin(pos_y[..., 0::2]), jnp.cos(pos_y[..., 1::2])], axis=4
    ).reshape(*pos_y.shape[:3], -1)
    return jnp.concatenate([pos_y, pos_x], axis=3)   # (B,H,W,hidden)


# ---------------------------------------------------------------------------
# Deterministic parameter init (nn.Linear-style uniform) + one-time fusion
# ---------------------------------------------------------------------------
def init_params(key):
    def linear_init(k, fan_in, fan_out):
        kw, kb = jax.random.split(k)
        bound = 1.0 / math.sqrt(fan_in)
        w = jax.random.uniform(kw, (fan_in, fan_out), jnp.float32, -bound, bound)
        b = jax.random.uniform(kb, (fan_out,), jnp.float32, -bound, bound)
        return w, b

    keys = jax.random.split(key, 16)
    p = {}
    p["bb_w"], p["bb_b"] = linear_init(keys[0], IMG_C, BACKBONE_C)      # backbone 1x1
    p["proj_w"], p["proj_b"] = linear_init(keys[1], BACKBONE_C, HIDDEN)  # input_proj
    p["query_embed"] = jax.random.normal(keys[2], (NUM_QUERIES, HIDDEN), jnp.float32)
    p["obj_w"], p["obj_b"] = linear_init(keys[3], HIDDEN, C_OBJ)
    p["verb_w"], p["verb_b"] = linear_init(keys[4], HIDDEN, C_VERB)
    p["sub_w1"], p["sub_b1"] = linear_init(keys[5], HIDDEN, HIDDEN)
    p["sub_w2"], p["sub_b2"] = linear_init(keys[6], HIDDEN, HIDDEN)
    p["sub_w3"], p["sub_b3"] = linear_init(keys[7], HIDDEN, 4)
    p["objb_w1"], p["objb_b1"] = linear_init(keys[8], HIDDEN, HIDDEN)
    p["objb_w2"], p["objb_b2"] = linear_init(keys[9], HIDDEN, HIDDEN)
    p["objb_w3"], p["objb_b3"] = linear_init(keys[10], HIDDEN, 4)
    return p


def prepare_fused_params(p):
    """One-time (outside jit) weight folding / concatenation."""
    fp = {}
    # backbone conv (.) input_proj folded into one linear (exact: no nonlinearity)
    fp["wf"] = p["bb_w"] @ p["proj_w"]                                  # (IMG_C, d)
    fp["bf"] = (p["bb_b"] @ p["proj_w"] + p["proj_b"]).reshape(1, -1)   # (1, d)
    fp["query_embed"] = p["query_embed"]
    # heads, layer 1: shared input h -> concat along output lanes
    fp["wc1"] = jnp.concatenate(
        [p["obj_w"], p["verb_w"], p["sub_w1"], p["objb_w1"]], axis=1)   # (d, 80)
    fp["bc1"] = jnp.concatenate(
        [p["obj_b"], p["verb_b"], p["sub_b1"], p["objb_b1"]]).reshape(1, -1)
    # bbox MLP layers 2/3: block-diagonal so the two MLPs share one matmul
    z_dd = jnp.zeros((HIDDEN, HIDDEN), jnp.float32)
    fp["wc2"] = jnp.block([[p["sub_w2"], z_dd], [z_dd, p["objb_w2"]]])  # (2d, 2d)
    fp["bc2"] = jnp.concatenate([p["sub_b2"], p["objb_b2"]]).reshape(1, -1)
    z_d4 = jnp.zeros((HIDDEN, 4), jnp.float32)
    fp["wc3"] = jnp.block([[p["sub_w3"], z_d4], [z_d4, p["objb_w3"]]])  # (2d, 8)
    fp["bc3"] = jnp.concatenate([p["sub_b3"], p["objb_b3"]]).reshape(1, -1)
    # positional embedding is a shape-only constant (no padding mask)
    mask = jnp.zeros((B, H, W), dtype=bool)
    fp["pos"] = sine_pos_embed(mask, HIDDEN).reshape(B, HW, HIDDEN)
    return fp


# ---------------------------------------------------------------------------
# Full forward (DETRHOI_orig.forward)
# ---------------------------------------------------------------------------
@partial(jax.jit, static_argnames=("aux_loss",))
def detrhoi_forward(samples, fparams, aux_loss=False):
    """samples: (B, IMG_C, H, W) float32 (NCHW, PyTorch convention)."""
    x_nhwc = samples.transpose(0, 2, 3, 1).reshape(B, HW, IMG_C)
    heads = pallas_fused_forward(x_nhwc, fparams)     # (L, B, Q, 24)

    outputs_obj_class = heads[..., :C_OBJ]
    outputs_verb_class = heads[..., C_OBJ:C_CLS]
    outputs_sub_coord = heads[..., C_CLS:C_CLS + 4]
    outputs_obj_coord = heads[..., C_CLS + 4:]

    out = {
        "pred_obj_logits": outputs_obj_class[-1],
        "pred_verb_logits": outputs_verb_class[-1],
        "pred_sub_boxes": outputs_sub_coord[-1],
        "pred_obj_boxes": outputs_obj_coord[-1],
    }
    if aux_loss:
        out["aux_outputs"] = [
            {"pred_obj_logits": a, "pred_verb_logits": b,
             "pred_sub_boxes": c, "pred_obj_boxes": d}
            for a, b, c, d in zip(outputs_obj_class[:-1],
                                  outputs_verb_class[:-1],
                                  outputs_sub_coord[:-1],
                                  outputs_obj_coord[:-1])
        ]
    return out


# ---------------------------------------------------------------------------
# Pure-JAX reference (unfused params) for correctness verification
# ---------------------------------------------------------------------------
def reference_forward(samples, p):
    x = samples.transpose(0, 2, 3, 1).reshape(B, HW, IMG_C)
    feat = x @ p["bb_w"] + p["bb_b"]                      # backbone stand-in
    mem = feat @ p["proj_w"] + p["proj_b"]                # input_proj
    pos = sine_pos_embed(jnp.zeros((B, H, W), bool), HIDDEN).reshape(B, HW, HIDDEN)
    keys = mem + pos
    scale = 1.0 / math.sqrt(HIDDEN)
    tgt = jnp.zeros((B, NUM_QUERIES, HIDDEN), jnp.float32)
    hs = []
    for _ in range(NUM_DEC_LAYERS):
        q = tgt + p["query_embed"][None]
        scores = jnp.einsum("bqd,bkd->bqk", q, keys) * scale
        attn = jax.nn.softmax(scores, axis=-1)
        tgt = tgt + jnp.einsum("bqk,bkd->bqd", attn, mem)
        hs.append(tgt)
    h = jnp.stack(hs, axis=0)                             # (L, B, Q, d)

    def mlp3(x, w1, b1, w2, b2, w3, b3):
        x = jnp.maximum(x @ w1 + b1, 0.0)
        x = jnp.maximum(x @ w2 + b2, 0.0)
        return x @ w3 + b3

    obj_cls = h @ p["obj_w"] + p["obj_b"]
    verb_cls = h @ p["verb_w"] + p["verb_b"]
    sub_box = jax.nn.sigmoid(mlp3(h, p["sub_w1"], p["sub_b1"],
                                  p["sub_w2"], p["sub_b2"],
                                  p["sub_w3"], p["sub_b3"]))
    obj_box = jax.nn.sigmoid(mlp3(h, p["objb_w1"], p["objb_b1"],
                                  p["objb_w2"], p["objb_b2"],
                                  p["objb_w3"], p["objb_b3"]))
    return obj_cls, verb_cls, sub_box, obj_box


# ---------------------------------------------------------------------------
if __name__ == "__main__":
    key = jax.random.PRNGKey(0)
    k_inp, k_par = jax.random.split(key)
    samples = jax.random.normal(k_inp, (B, IMG_C, H, W), jnp.float32)
    params = init_params(k_par)
    fparams = prepare_fused_params(params)

    out = detrhoi_forward(samples, fparams, aux_loss=True)
    jax.block_until_ready(out)

    # shape / range checks
    assert out["pred_obj_logits"].shape == (B, NUM_QUERIES, C_OBJ)
    assert out["pred_verb_logits"].shape == (B, NUM_QUERIES, C_VERB)
    assert out["pred_sub_boxes"].shape == (B, NUM_QUERIES, 4)
    assert out["pred_obj_boxes"].shape == (B, NUM_QUERIES, 4)
    assert len(out["aux_outputs"]) == NUM_DEC_LAYERS - 1
    assert bool(jnp.all(out["pred_sub_boxes"] >= 0)
                & jnp.all(out["pred_sub_boxes"] <= 1))

    # numerical check vs. pure-JAX reference built from the unfused params
    r_obj, r_verb, r_sub, r_objb = reference_forward(samples, params)
    assert bool(jnp.allclose(out["pred_obj_logits"], r_obj[-1], atol=1e-3, rtol=1e-3))
    assert bool(jnp.allclose(out["pred_verb_logits"], r_verb[-1], atol=1e-3, rtol=1e-3))
    assert bool(jnp.allclose(out["pred_sub_boxes"], r_sub[-1], atol=1e-3, rtol=1e-3))
    assert bool(jnp.allclose(out["pred_obj_boxes"], r_objb[-1], atol=1e-3, rtol=1e-3))

    print("KERNEL_OK")
</pallas_src>

<mosaic_0001>
module attributes {stable_mosaic.version = 11 : i64} {
  func.func @_fused_kernel(%arg0: i32, %arg1: memref<1x256x3xf32, #tpu.memory_space<vmem>>, %arg2: memref<1x256x32xf32, #tpu.memory_space<vmem>>, %arg3: memref<3x32xf32, #tpu.memory_space<vmem>>, %arg4: memref<1x32xf32, #tpu.memory_space<vmem>>, %arg5: memref<8x32xf32, #tpu.memory_space<vmem>>, %arg6: memref<32x80xf32, #tpu.memory_space<vmem>>, %arg7: memref<1x80xf32, #tpu.memory_space<vmem>>, %arg8: memref<64x64xf32, #tpu.memory_space<vmem>>, %arg9: memref<1x64xf32, #tpu.memory_space<vmem>>, %arg10: memref<64x8xf32, #tpu.memory_space<vmem>>, %arg11: memref<1x8xf32, #tpu.memory_space<vmem>>, %arg12: memref<2x1x8x24xf32, #tpu.memory_space<vmem>>) attributes {dimension_semantics = [#tpu.dimension_semantics<parallel>], iteration_bounds = array<i64: 2>, scalar_prefetch = 0 : i64, scratch_operands = 0 : i64, tpu.core_type = #tpu.core_type<tc>, window_params = [{transform_indices = @transform_0, window_bounds = array<i64: 1, 256, 3>}, {transform_indices = @transform_1, window_bounds = array<i64: 1, 256, 32>}, {pipeline_mode = #tpu.pipeline_mode<synchronous>, transform_indices = @transform_2, window_bounds = array<i64: 3, 32>}, {pipeline_mode = #tpu.pipeline_mode<synchronous>, transform_indices = @transform_3, window_bounds = array<i64: 1, 32>}, {pipeline_mode = #tpu.pipeline_mode<synchronous>, transform_indices = @transform_4, window_bounds = array<i64: 8, 32>}, {pipeline_mode = #tpu.pipeline_mode<synchronous>, transform_indices = @transform_5, window_bounds = array<i64: 32, 80>}, {pipeline_mode = #tpu.pipeline_mode<synchronous>, transform_indices = @transform_6, window_bounds = array<i64: 1, 80>}, {pipeline_mode = #tpu.pipeline_mode<synchronous>, transform_indices = @transform_7, window_bounds = array<i64: 64, 64>}, {pipeline_mode = #tpu.pipeline_mode<synchronous>, transform_indices = @transform_8, window_bounds = array<i64: 1, 64>}, {pipeline_mode = #tpu.pipeline_mode<synchronous>, transform_indices = @transform_9, window_bounds = array<i64: 64, 8>}, {pipeline_mode = #tpu.pipeline_mode<synchronous>, transform_indices = @transform_10, window_bounds = array<i64: 1, 8>}, {transform_indices = @transform_11, window_bounds = array<i64: 2, 1, 8, 24>}]} {
    %c0 = arith.constant 0 : index
    %c0_0 = arith.constant 0 : index
    %c0_1 = arith.constant 0 : index
    %0 = vector.load %arg1[%c0, %c0_0, %c0_1] : memref<1x256x3xf32, #tpu.memory_space<vmem>>, vector<1x256x3xf32>
    %1 = vector.shape_cast %0 : vector<1x256x3xf32> to vector<256x3xf32>
    %c0_2 = arith.constant 0 : index
    %c0_3 = arith.constant 0 : index
    %c0_4 = arith.constant 0 : index
    %2 = vector.load %arg2[%c0_2, %c0_3, %c0_4] : memref<1x256x32xf32, #tpu.memory_space<vmem>>, vector<1x256x32xf32>
    %3 = vector.shape_cast %2 : vector<1x256x32xf32> to vector<256x32xf32>
    %c0_5 = arith.constant 0 : index
    %c0_6 = arith.constant 0 : index
    %4 = vector.load %arg4[%c0_5, %c0_6] : memref<1x32xf32, #tpu.memory_space<vmem>>, vector<1x32xf32>
    %5 = vector.extract_strided_slice %1 {offsets = [0, 0], sizes = [256, 1], strides = [1, 1]} : vector<256x3xf32> to vector<256x1xf32>
    %c0_7 = arith.constant 0 : index
    %c0_8 = arith.constant 0 : index
    %6 = vector.load %arg3[%c0_7, %c0_8] : memref<3x32xf32, #tpu.memory_space<vmem>>, vector<1x32xf32>
    %7 = vector.broadcast %5 : vector<256x1xf32> to vector<256x32xf32>
    %8 = vector.broadcast %6 : vector<1x32xf32> to vector<256x32xf32>
    %9 = arith.mulf %7, %8 : vector<256x32xf32>
    %10 = vector.broadcast %4 : vector<1x32xf32> to vector<256x32xf32>
    %11 = arith.addf %10, %9 : vector<256x32xf32>
    %12 = vector.extract_strided_slice %1 {offsets = [0, 1], sizes = [256, 1], strides = [1, 1]} : vector<256x3xf32> to vector<256x1xf32>
    %c1 = arith.constant 1 : index
    %c0_9 = arith.constant 0 : index
    %13 = vector.load %arg3[%c1, %c0_9] : memref<3x32xf32, #tpu.memory_space<vmem>>, vector<1x32xf32>
    %14 = vector.broadcast %12 : vector<256x1xf32> to vector<256x32xf32>
    %15 = vector.broadcast %13 : vector<1x32xf32> to vector<256x32xf32>
    %16 = arith.mulf %14, %15 : vector<256x32xf32>
    %17 = arith.addf %11, %16 : vector<256x32xf32>
    %18 = vector.extract_strided_slice %1 {offsets = [0, 2], sizes = [256, 1], strides = [1, 1]} : vector<256x3xf32> to vector<256x1xf32>
    %c2 = arith.constant 2 : index
    %c0_10 = arith.constant 0 : index
    %19 = vector.load %arg3[%c2, %c0_10] : memref<3x32xf32, #tpu.memory_space<vmem>>, vector<1x32xf32>
    %20 = vector.broadcast %18 : vector<256x1xf32> to vector<256x32xf32>
    %21 = vector.broadcast %19 : vector<1x32xf32> to vector<256x32xf32>
    %22 = arith.mulf %20, %21 : vector<256x32xf32>
    %23 = arith.addf %17, %22 : vector<256x32xf32>
    %24 = arith.addf %23, %3 : vector<256x32xf32>
    %c0_11 = arith.constant 0 : index
    %c0_12 = arith.constant 0 : index
    %25 = vector.load %arg5[%c0_11, %c0_12] : memref<8x32xf32, #tpu.memory_space<vmem>>, vector<8x32xf32>
    %cst = arith.constant 0.000000e+00 : f32
    %26 = vector.broadcast %cst : f32 to vector<8x32xf32>
    %27 = arith.addf %26, %25 : vector<8x32xf32>
    %cst_13 = arith.constant dense<0.000000e+00> : vector<8x256xf32>
    %28 = tpu.matmul %27, %24, %cst_13 {dimension_numbers = #tpu.dot_dimension_numbers<[1], [1], [0], [0], [0, 0, 1, 0], [], []>} : vector<8x32xf32>, vector<256x32xf32>, vector<8x256xf32> -> vector<8x256xf32>
    %cst_14 = arith.constant 0.176776692 : f32
    %29 = vector.broadcast %cst_14 : f32 to vector<8x256xf32>
    %30 = arith.mulf %28, %29 : vector<8x256xf32>
    %cst_15 = arith.constant dense<0xFF800000> : vector<8xf32>
    %31 = vector.multi_reduction <maximumf>, %30, %cst_15 [1] : vector<8x256xf32> to vector<8xf32>
    %cst_16 = arith.constant 0xFF800000 : f32
    %32 = vector.broadcast %cst_16 : f32 to vector<8xf32>
    %33 = arith.maximumf %32, %31 : vector<8xf32>
    %34 = vector.shape_cast %33 : vector<8xf32> to vector<8x1xf32>
    %35 = vector.broadcast %34 : vector<8x1xf32> to vector<8x256xf32>
    %36 = arith.subf %30, %35 : vector<8x256xf32>
    %37 = math.exp %36 : vector<8x256xf32>
    %cst_17 = arith.constant dense<0.000000e+00> : vector<8xf32>
    %38 = vector.multi_reduction <add>, %37, %cst_17 [1] : vector<8x256xf32> to vector<8xf32>
    %39 = vector.shape_cast %38 : vector<8xf32> to vector<8x1xf32>
    %40 = vector.broadcast %39 : vector<8x1xf32> to vector<8x256xf32>
    %41 = arith.divf %37, %40 : vector<8x256xf32>
    %cst_18 = arith.constant dense<0.000000e+00> : vector<8x32xf32>
    %42 = tpu.matmul %41, %23, %cst_18 {dimension_numbers = #tpu.dot_dimension_numbers<[1], [0], [0], [1], [0, 0, 1, 1], [], []>} : vector<8x256xf32>, vector<256x32xf32>, vector<8x32xf32> -> vector<8x32xf32>
    %43 = arith.addf %26, %42 : vector<8x32xf32>
    %44 = arith.addf %43, %25 : vector<8x32xf32>
    %cst_19 = arith.constant dense<0.000000e+00> : vector<8x256xf32>
    %45 = tpu.matmul %44, %24, %cst_19 {dimension_numbers = #tpu.dot_dimension_numbers<[1], [1], [0], [0], [0, 0, 1, 0], [], []>} : vector<8x32xf32>, vector<256x32xf32>, vector<8x256xf32> -> vector<8x256xf32>
    %cst_20 = arith.constant 0.176776692 : f32
    %46 = vector.broadcast %cst_20 : f32 to vector<8x256xf32>
    %47 = arith.mulf %45, %46 : vector<8x256xf32>
    %cst_21 = arith.constant dense<0xFF800000> : vector<8xf32>
    %48 = vector.multi_reduction <maximumf>, %47, %cst_21 [1] : vector<8x256xf32> to vector<8xf32>
    %cst_22 = arith.constant 0xFF800000 : f32
    %49 = vector.broadcast %cst_22 : f32 to vector<8xf32>
    %50 = arith.maximumf %49, %48 : vector<8xf32>
    %51 = vector.shape_cast %50 : vector<8xf32> to vector<8x1xf32>
    %52 = vector.broadcast %51 : vector<8x1xf32> to vector<8x256xf32>
    %53 = arith.subf %47, %52 : vector<8x256xf32>
    %54 = math.exp %53 : vector<8x256xf32>
    %cst_23 = arith.constant dense<0.000000e+00> : vector<8xf32>
    %55 = vector.multi_reduction <add>, %54, %cst_23 [1] : vector<8x256xf32> to vector<8xf32>
    %56 = vector.shape_cast %55 : vector<8xf32> to vector<8x1xf32>
    %57 = vector.broadcast %56 : vector<8x1xf32> to vector<8x256xf32>
    %58 = arith.divf %54, %57 : vector<8x256xf32>
    %cst_24 = arith.constant dense<0.000000e+00> : vector<8x32xf32>
    %59 = tpu.matmul %58, %23, %cst_24 {dimension_numbers = #tpu.dot_dimension_numbers<[1], [0], [0], [1], [0, 0, 1, 1], [], []>} : vector<8x256xf32>, vector<256x32xf32>, vector<8x32xf32> -> vector<8x32xf32>
    %60 = arith.addf %43, %59 : vector<8x32xf32>
    %61 = tpu.concatenate %43, %60 in 0 : vector<8x32xf32>, vector<8x32xf32> -> vector<16x32xf32>
    %c0_25 = arith.constant 0 : index
    %c0_26 = arith.constant 0 : index
    %62 = vector.load %arg6[%c0_25, %c0_26] : memref<32x80xf32, #tpu.memory_space<vmem>>, vector<32x80xf32>
    %cst_27 = arith.constant dense<0.000000e+00> : vector<16x80xf32>
    %63 = tpu.matmul %61, %62, %cst_27 {dimension_numbers = #tpu.dot_dimension_numbers<[1], [0], [0], [1], [0, 0, 1, 1], [], []>} : vector<16x32xf32>, vector<32x80xf32>, vector<16x80xf32> -> vector<16x80xf32>
    %c0_28 = arith.constant 0 : index
    %c0_29 = arith.constant 0 : index
    %64 = vector.load %arg7[%c0_28, %c0_29] : memref<1x80xf32, #tpu.memory_space<vmem>>, vector<1x80xf32>
    %65 = vector.broadcast %64 : vector<1x80xf32> to vector<16x80xf32>
    %66 = arith.addf %63, %65 : vector<16x80xf32>
    %67 = vector.extract_strided_slice %66 {offsets = [0, 0], sizes = [16, 16], strides = [1, 1]} : vector<16x80xf32> to vector<16x16xf32>
    %68 = vector.extract_strided_slice %66 {offsets = [0, 16], sizes = [16, 64], strides = [1, 1]} : vector<16x80xf32> to vector<16x64xf32>
    %cst_30 = arith.constant 0.000000e+00 : f32
    %69 = vector.broadcast %cst_30 : f32 to vector<16x64xf32>
    %70 = arith.maximumf %68, %69 : vector<16x64xf32>
    %c0_31 = arith.constant 0 : index
    %c0_32 = arith.constant 0 : index
    %71 = vector.load %arg8[%c0_31, %c0_32] : memref<64x64xf32, #tpu.memory_space<vmem>>, vector<64x64xf32>
    %cst_33 = arith.constant dense<0.000000e+00> : vector<16x64xf32>
    %72 = tpu.matmul %70, %71, %cst_33 {dimension_numbers = #tpu.dot_dimension_numbers<[1], [0], [0], [1], [0, 0, 1, 1], [], []>} : vector<16x64xf32>, vector<64x64xf32>, vector<16x64xf32> -> vector<16x64xf32>
    %c0_34 = arith.constant 0 : index
    %c0_35 = arith.constant 0 : index
    %73 = vector.load %arg9[%c0_34, %c0_35] : memref<1x64xf32, #tpu.memory_space<vmem>>, vector<1x64xf32>
    %74 = vector.broadcast %73 : vector<1x64xf32> to vector<16x64xf32>
    %75 = arith.addf %72, %74 : vector<16x64xf32>
    %cst_36 = arith.constant 0.000000e+00 : f32
    %76 = vector.broadcast %cst_36 : f32 to vector<16x64xf32>
    %77 = arith.maximumf %75, %76 : vector<16x64xf32>
    %c0_37 = arith.constant 0 : index
    %c0_38 = arith.constant 0 : index
    %78 = vector.load %arg10[%c0_37, %c0_38] : memref<64x8xf32, #tpu.memory_space<vmem>>, vector<64x8xf32>
    %cst_39 = arith.constant dense<0.000000e+00> : vector<16x8xf32>
    %79 = tpu.matmul %77, %78, %cst_39 {dimension_numbers = #tpu.dot_dimension_numbers<[1], [0], [0], [1], [0, 0, 1, 1], [], []>} : vector<16x64xf32>, vector<64x8xf32>, vector<16x8xf32> -> vector<16x8xf32>
    %c0_40 = arith.constant 0 : index
    %c0_41 = arith.constant 0 : index
    %80 = vector.load %arg11[%c0_40, %c0_41] : memref<1x8xf32, #tpu.memory_space<vmem>>, vector<1x8xf32>
    %81 = vector.broadcast %80 : vector<1x8xf32> to vector<16x8xf32>
    %82 = arith.addf %79, %81 : vector<16x8xf32>
    %83 = arith.negf %82 : vector<16x8xf32>
    %84 = math.exp %83 : vector<16x8xf32>
    %cst_42 = arith.constant 1.000000e+00 : f32
    %85 = vector.broadcast %cst_42 : f32 to vector<16x8xf32>
    %86 = arith.addf %85, %84 : vector<16x8xf32>
    %87 = arith.divf %85, %86 : vector<16x8xf32>
    %88 = tpu.concatenate %67, %87 in 1 : vector<16x16xf32>, vector<16x8xf32> -> vector<16x24xf32>
    %89 = vector.extract_strided_slice %88 {offsets = [0, 0], sizes = [8, 24], strides = [1, 1]} : vector<16x24xf32> to vector<8x24xf32>
    %c0_43 = arith.constant 0 : index
    %c0_44 = arith.constant 0 : index
    %c0_45 = arith.constant 0 : index
    %c0_46 = arith.constant 0 : index
    %90 = vector.load %arg12[%c0_43, %c0_44, %c0_45, %c0_46] : memref<2x1x8x24xf32, #tpu.memory_space<vmem>>, vector<1x1x8x24xf32>
    %91 = vector.shape_cast %90 : vector<1x1x8x24xf32> to vector<8x24xf32>
    %92 = vector.shape_cast %89 : vector<8x24xf32> to vector<1x1x8x24xf32>
    tpu.vector_store %arg12[%c0_43, %c0_44, %c0_45, %c0_46], %92 {strides = array<i32>} : memref<2x1x8x24xf32, #tpu.memory_space<vmem>>, vector<1x1x8x24xf32>,
    %93 = vector.extract_strided_slice %88 {offsets = [8, 0], sizes = [8, 24], strides = [1, 1]} : vector<16x24xf32> to vector<8x24xf32>
    %c1_47 = arith.constant 1 : index
    %c0_48 = arith.constant 0 : index
    %c0_49 = arith.constant 0 : index
    %c0_50 = arith.constant 0 : index
    %94 = vector.load %arg12[%c1_47, %c0_48, %c0_49, %c0_50] : memref<2x1x8x24xf32, #tpu.memory_space<vmem>>, vector<1x1x8x24xf32>
    %95 = vector.shape_cast %94 : vector<1x1x8x24xf32> to vector<8x24xf32>
    %96 = vector.shape_cast %93 : vector<8x24xf32> to vector<1x1x8x24xf32>
    tpu.vector_store %arg12[%c1_47, %c0_48, %c0_49, %c0_50], %96 {strides = array<i32>} : memref<2x1x8x24xf32, #tpu.memory_space<vmem>>, vector<1x1x8x24xf32>,
    return
  }
  func.func @transform_0(%arg0: i32) -> (i32, i32, i32) {
    %c0_i32 = arith.constant 0 : i32
    %c0_i32_0 = arith.constant 0 : i32
    %c0_i32_1 = arith.constant 0 : i32
    return %arg0, %c0_i32, %c0_i32_0 : i32, i32, i32
  }
  func.func @transform_1(%arg0: i32) -> (i32, i32, i32) {
    %c0_i32 = arith.constant 0 : i32
    %c0_i32_0 = arith.constant 0 : i32
    %c0_i32_1 = arith.constant 0 : i32
    return %arg0, %c0_i32, %c0_i32_0 : i32, i32, i32
  }
  func.func @transform_2(%arg0: i32) -> (i32, i32) {
    %c0_i32 = arith.constant 0 : i32
    %c0_i32_0 = arith.constant 0 : i32
    %c0_i32_1 = arith.constant 0 : i32
    return %c0_i32, %c0_i32_0 : i32, i32
  }
  func.func @transform_3(%arg0: i32) -> (i32, i32) {
    %c0_i32 = arith.constant 0 : i32
    %c0_i32_0 = arith.constant 0 : i32
    %c0_i32_1 = arith.constant 0 : i32
    return %c0_i32, %c0_i32_0 : i32, i32
  }
  func.func @transform_4(%arg0: i32) -> (i32, i32) {
    %c0_i32 = arith.constant 0 : i32
    %c0_i32_0 = arith.constant 0 : i32
    %c0_i32_1 = arith.constant 0 : i32
    return %c0_i32, %c0_i32_0 : i32, i32
  }
  func.func @transform_5(%arg0: i32) -> (i32, i32) {
    %c0_i32 = arith.constant 0 : i32
    %c0_i32_0 = arith.constant 0 : i32
    %c0_i32_1 = arith.constant 0 : i32
    return %c0_i32, %c0_i32_0 : i32, i32
  }
  func.func @transform_6(%arg0: i32) -> (i32, i32) {
    %c0_i32 = arith.constant 0 : i32
    %c0_i32_0 = arith.constant 0 : i32
    %c0_i32_1 = arith.constant 0 : i32
    return %c0_i32, %c0_i32_0 : i32, i32
  }
  func.func @transform_7(%arg0: i32) -> (i32, i32) {
    %c0_i32 = arith.constant 0 : i32
    %c0_i32_0 = arith.constant 0 : i32
    %c0_i32_1 = arith.constant 0 : i32
    return %c0_i32, %c0_i32_0 : i32, i32
  }
  func.func @transform_8(%arg0: i32) -> (i32, i32) {
    %c0_i32 = arith.constant 0 : i32
    %c0_i32_0 = arith.constant 0 : i32
    %c0_i32_1 = arith.constant 0 : i32
    return %c0_i32, %c0_i32_0 : i32, i32
  }
  func.func @transform_9(%arg0: i32) -> (i32, i32) {
    %c0_i32 = arith.constant 0 : i32
    %c0_i32_0 = arith.constant 0 : i32
    %c0_i32_1 = arith.constant 0 : i32
    return %c0_i32, %c0_i32_0 : i32, i32
  }
  func.func @transform_10(%arg0: i32) -> (i32, i32) {
    %c0_i32 = arith.constant 0 : i32
    %c0_i32_0 = arith.constant 0 : i32
    %c0_i32_1 = arith.constant 0 : i32
    return %c0_i32, %c0_i32_0 : i32, i32
  }
  func.func @transform_11(%arg0: i32) -> (i32, i32, i32, i32) {
    %c0_i32 = arith.constant 0 : i32
    %c0_i32_0 = arith.constant 0 : i32
    %c0_i32_1 = arith.constant 0 : i32
    %c0_i32_2 = arith.constant 0 : i32
    return %c0_i32, %arg0, %c0_i32_0, %c0_i32_1 : i32, i32, i32, i32
  }
}

</mosaic_0001>

<llo_original>
// kernel: detrhoi_forward.1
$region0: #{detrhoi_forward.1}
  #allocation0 [shape = 'u32[]', space=smem, size = 0x4, offset = 0x4, fixed_abs, tag = 'smem constant byte address 0x4 - core index']
  #allocation1 [shape = 'u32[72,128]{1,0:T(1,128)}', space=vmem, size = 0x9000, scoped, tag = 'internal scratch']
  %s0 = inlined_call_operand.vmem [shape: f32[2,256,3], index: 0, kind: input, shape index: {}]
  %s1 = inlined_call_operand.vmem [shape: f32[2,256,32], index: 1, kind: input, shape index: {}]
  %s2 = inlined_call_operand.vmem [shape: f32[3,32], index: 2, kind: input, shape index: {}]
  %s3 = inlined_call_operand.vmem [shape: f32[1,32], index: 3, kind: input, shape index: {}]
  %s4 = inlined_call_operand.vmem [shape: f32[8,32], index: 4, kind: input, shape index: {}]
  %s5 = inlined_call_operand.vmem [shape: f32[32,80], index: 5, kind: input, shape index: {}]
  %s6 = inlined_call_operand.vmem [shape: f32[1,80], index: 6, kind: input, shape index: {}]
  %s7 = inlined_call_operand.vmem [shape: f32[64,64], index: 7, kind: input, shape index: {}]
  %s8 = inlined_call_operand.vmem [shape: f32[1,64], index: 8, kind: input, shape index: {}]
  %s9 = inlined_call_operand.vmem [shape: f32[64,8], index: 9, kind: input, shape index: {}]
  %s10 = inlined_call_operand.vmem [shape: f32[1,8], index: 10, kind: input, shape index: {}]
  %s11 = inlined_call_operand.vmem [shape: f32[2,2,8,24], index: 11, kind: output, shape index: {}]
  %s12 = sld [smem:[#allocation0]]
  $region111: #{detrhoi_forward.1} parent=0
    _
  %s14 = ssub.s32 1, %s12
  %s15 = scalar_select 0, %s14, %s12
  $region1: #{detrhoi_forward.1} parent=0
    #allocation2 [shape = 'u8[16384]{0}', space=vmem, size = 0x4000, scoped, tag = 'output window, operand 0']
    loop: start=0, step=1, limit=4
    $region2: #{detrhoi_forward.1} parent=1 // loop_pre_header
      _
    $region3: #{detrhoi_forward.1} parent=1 // loop_header
      %s17 = sphi 0, %s21
      %p18 = scmp.ge.s32.totalorder %s17, 4
      %s27 = sphi 0, %s29
      %s30 = sphi 0, %s27
      %s31 = sphi 0, %s30
      %s47 = sphi 0, %s31
      %s53 = sphi 0, %s55
      %s56 = sphi 0, %s53
      %s57 = sphi 0, %s56
      %s73 = sphi 0, %s57
      %s77 = sphi 0, %s77
      %s79 = sphi 0, %s77
      %s80 = sphi 0, %s79
      %s94 = sphi 0, %s80
      %s98 = sphi 0, %s98
      %s100 = sphi 0, %s98
      %s101 = sphi 0, %s100
      %s115 = sphi 0, %s101
      %s119 = sphi 0, %s119
      %s121 = sphi 0, %s119
      %s122 = sphi 0, %s121
      %s136 = sphi 0, %s122
      %s140 = sphi 0, %s140
      %s142 = sphi 0, %s140
      %s143 = sphi 0, %s142
      %s157 = sphi 0, %s143
      %s161 = sphi 0, %s161
      %s163 = sphi 0, %s161
      %s164 = sphi 0, %s163
      %s178 = sphi 0, %s164
      %s182 = sphi 0, %s182
      %s184 = sphi 0, %s182
      %s185 = sphi 0, %s184
      %s199 = sphi 0, %s185
      %s203 = sphi 0, %s203
      %s205 = sphi 0, %s203
      %s206 = sphi 0, %s205
      %s220 = sphi 0, %s206
      %s224 = sphi 0, %s224
      %s226 = sphi 0, %s224
      %s227 = sphi 0, %s226
      %s241 = sphi 0, %s227
      %s245 = sphi 0, %s245
      %s247 = sphi 0, %s245
      %s248 = sphi 0, %s247
      %s262 = sphi 0, %s248
      %s268 = sphi 0, %s270
      %s271 = sphi 0, %s268
      %s272 = sphi 0, %s271
      %s288 = sphi 0, %s272
    $region4: #{detrhoi_forward.1} parent=1 // loop_header_branch
      %20 = sbr.rel (%p18) target = $region8
    $region5: #{detrhoi_forward.1} parent=1 // loop_body
      %s22 = ssub.s32 %s17, 1
      %s23 = ssub.s32 %s17, 2
      %s24 = sadd.s32 %s17, 1
      %s25 = ssub.s32 %s17, %s24
      %p26 = scmp.eq.s32.totalorder %s25, 0
      %s28 = sadd.s32 %s27, 1
      %s29 = scalar_select %p26, %s27, %s28
      %p32 = pneg %p26
      %p33 = scmp.eq.s32.totalorder %s17, 1
      %p34 = por %p32, %p33
      %p35 = scmp.ne.s32.totalorder %s27, %s30
      %p36 = scmp.eq.s32.totalorder %s17, 0
      %p37 = por %p35, %p36
      %p38 = scmp.ne.s32.totalorder %s27, %s30
      %p39 = scmp.eq.s32.totalorder %s22, 1
      %p40 = por %p38, %p39
      %p41 = scmp.ne.s32.totalorder %s30, %s31
      %p42 = scmp.eq.s32.totalorder %s22, 0
      %p43 = por %p41, %p42
      %p44 = scmp.ne.s32.totalorder %s30, %s31
      %p45 = scmp.eq.s32.totalorder %s23, 1
      %p46 = por %p44, %p45
      %p48 = scmp.ne.s32.totalorder %s31, %s47
      %p49 = scmp.eq.s32.totalorder %s23, 0
      %p50 = por %p48, %p49
      %s51 = ssub.s32 %s17, %s24
      %p52 = scmp.eq.s32.totalorder %s51, 0
      %s54 = sadd.s32 %s53, 1
      %s55 = scalar_select %p52, %s53, %s54
      %p58 = pneg %p52
      %p59 = scmp.eq.s32.totalorder %s17, 1
      %p60 = por %p58, %p59
      %p61 = scmp.ne.s32.totalorder %s53, %s56
      %p62 = scmp.eq.s32.totalorder %s17, 0
      %p63 = por %p61, %p62
      %p64 = scmp.ne.s32.totalorder %s53, %s56
      %p65 = scmp.eq.s32.totalorder %s22, 1
      %p66 = por %p64, %p65
      %p67 = scmp.ne.s32.totalorder %s56, %s57
      %p68 = scmp.eq.s32.totalorder %s22, 0
      %p69 = por %p67, %p68
      %p70 = scmp.ne.s32.totalorder %s56, %s57
      %p71 = scmp.eq.s32.totalorder %s23, 1
      %p72 = por %p70, %p71
      %p74 = scmp.ne.s32.totalorder %s57, %s73
      %p75 = scmp.eq.s32.totalorder %s23, 0
      %p76 = por %p74, %p75
      %s78 = sadd.s32 %s77, 1
      %p81 = scmp.eq.s32.totalorder %s17, 1
      %p82 = scmp.ne.s32.totalorder %s77, %s79
      %p83 = scmp.eq.s32.totalorder %s17, 0
      %p84 = por %p82, %p83
      %p85 = scmp.ne.s32.totalorder %s77, %s79
      %p86 = scmp.eq.s32.totalorder %s22, 1
      %p87 = por %p85, %p86
      %p88 = scmp.ne.s32.totalorder %s79, %s80
      %p89 = scmp.eq.s32.totalorder %s22, 0
      %p90 = por %p88, %p89
      %p91 = scmp.ne.s32.totalorder %s79, %s80
      %p92 = scmp.eq.s32.totalorder %s23, 1
      %p93 = por %p91, %p92
      %p95 = scmp.ne.s32.totalorder %s80, %s94
      %p96 = scmp.eq.s32.totalorder %s23, 0
      %p97 = por %p95, %p96
      %s99 = sadd.s32 %s98, 1
      %p102 = scmp.eq.s32.totalorder %s17, 1
      %p103 = scmp.ne.s32.totalorder %s98, %s100
      %p104 = scmp.eq.s32.totalorder %s17, 0
      %p105 = por %p103, %p104
      %p106 = scmp.ne.s32.totalorder %s98, %s100
      %p107 = scmp.eq.s32.totalorder %s22, 1
      %p108 = por %p106, %p107
      %p109 = scmp.ne.s32.totalorder %s100, %s101
      %p110 = scmp.eq.s32.totalorder %s22, 0
      %p111 = por %p109, %p110
      %p112 = scmp.ne.s32.totalorder %s100, %s101
      %p113 = scmp.eq.s32.totalorder %s23, 1
      %p114 = por %p112, %p113
      %p116 = scmp.ne.s32.totalorder %s101, %s115
      %p117 = scmp.eq.s32.totalorder %s23, 0
      %p118 = por %p116, %p117
      %s120 = sadd.s32 %s119, 1
      %p123 = scmp.eq.s32.totalorder %s17, 1
      %p124 = scmp.ne.s32.totalorder %s119, %s121
      %p125 = scmp.eq.s32.totalorder %s17, 0
      %p126 = por %p124, %p125
      %p127 = scmp.ne.s32.totalorder %s119, %s121
      %p128 = scmp.eq.s32.totalorder %s22, 1
      %p129 = por %p127, %p128
      %p130 = scmp.ne.s32.totalorder %s121, %s122
      %p131 = scmp.eq.s32.totalorder %s22, 0
      %p132 = por %p130, %p131
      %p133 = scmp.ne.s32.totalorder %s121, %s122
      %p134 = scmp.eq.s32.totalorder %s23, 1
      %p135 = por %p133, %p134
      %p137 = scmp.ne.s32.totalorder %s122, %s136
      %p138 = scmp.eq.s32.totalorder %s23, 0
      %p139 = por %p137, %p138
      %s141 = sadd.s32 %s140, 1
      %p144 = scmp.eq.s32.totalorder %s17, 1
      %p145 = scmp.ne.s32.totalorder %s140, %s142
      %p146 = scmp.eq.s32.totalorder %s17, 0
      %p147 = por %p145, %p146
      %p148 = scmp.ne.s32.totalorder %s140, %s142
      %p149 = scmp.eq.s32.totalorder %s22, 1
      %p150 = por %p148, %p149
      %p151 = scmp.ne.s32.totalorder %s142, %s143
      %p152 = scmp.eq.s32.totalorder %s22, 0
      %p153 = por %p151, %p152
      %p154 = scmp.ne.s32.totalorder %s142, %s143
      %p155 = scmp.eq.s32.totalorder %s23, 1
      %p156 = por %p154, %p155
      %p158 = scmp.ne.s32.totalorder %s143, %s157
      %p159 = scmp.eq.s32.totalorder %s23, 0
      %p160 = por %p158, %p159
      %s162 = sadd.s32 %s161, 1
      %p165 = scmp.eq.s32.totalorder %s17, 1
      %p166 = scmp.ne.s32.totalorder %s161, %s163
      %p167 = scmp.eq.s32.totalorder %s17, 0
      %p168 = por %p166, %p167
      %p169 = scmp.ne.s32.totalorder %s161, %s163
      %p170 = scmp.eq.s32.totalorder %s22, 1
      %p171 = por %p169, %p170
      %p172 = scmp.ne.s32.totalorder %s163, %s164
      %p173 = scmp.eq.s32.totalorder %s22, 0
      %p174 = por %p172, %p173
      %p175 = scmp.ne.s32.totalorder %s163, %s164
      %p176 = scmp.eq.s32.totalorder %s23, 1
      %p177 = por %p175, %p176
      %p179 = scmp.ne.s32.totalorder %s164, %s178
      %p180 = scmp.eq.s32.totalorder %s23, 0
      %p181 = por %p179, %p180
      %s183 = sadd.s32 %s182, 1
      %p186 = scmp.eq.s32.totalorder %s17, 1
      %p187 = scmp.ne.s32.totalorder %s182, %s184
      %p188 = scmp.eq.s32.totalorder %s17, 0
      %p189 = por %p187, %p188
      %p190 = scmp.ne.s32.totalorder %s182, %s184
      %p191 = scmp.eq.s32.totalorder %s22, 1
      %p192 = por %p190, %p191
      %p193 = scmp.ne.s32.totalorder %s184, %s185
      %p194 = scmp.eq.s32.totalorder %s22, 0
      %p195 = por %p193, %p194
      %p196 = scmp.ne.s32.totalorder %s184, %s185
      %p197 = scmp.eq.s32.totalorder %s23, 1
      %p198 = por %p196, %p197
      %p200 = scmp.ne.s32.totalorder %s185, %s199
      %p201 = scmp.eq.s32.totalorder %s23, 0
      %p202 = por %p200, %p201
      %s204 = sadd.s32 %s203, 1
      %p207 = scmp.eq.s32.totalorder %s17, 1
      %p208 = scmp.ne.s32.totalorder %s203, %s205
      %p209 = scmp.eq.s32.totalorder %s17, 0
      %p210 = por %p208, %p209
      %p211 = scmp.ne.s32.totalorder %s203, %s205
      %p212 = scmp.eq.s32.totalorder %s22, 1
      %p213 = por %p211, %p212
      %p214 = scmp.ne.s32.totalorder %s205, %s206
      %p215 = scmp.eq.s32.totalorder %s22, 0
      %p216 = por %p214, %p215
      %p217 = scmp.ne.s32.totalorder %s205, %s206
      %p218 = scmp.eq.s32.totalorder %s23, 1
      %p219 = por %p217, %p218
      %p221 = scmp.ne.s32.totalorder %s206, %s220
      %p222 = scmp.eq.s32.totalorder %s23, 0
      %p223 = por %p221, %p222
      %s225 = sadd.s32 %s224, 1
      %p228 = scmp.eq.s32.totalorder %s17, 1
      %p229 = scmp.ne.s32.totalorder %s224, %s226
      %p230 = scmp.eq.s32.totalorder %s17, 0
      %p231 = por %p229, %p230
      %p232 = scmp.ne.s32.totalorder %s224, %s226
      %p233 = scmp.eq.s32.totalorder %s22, 1
      %p234 = por %p232, %p233
      %p235 = scmp.ne.s32.totalorder %s226, %s227
      %p236 = scmp.eq.s32.totalorder %s22, 0
      %p237 = por %p235, %p236
      %p238 = scmp.ne.s32.totalorder %s226, %s227
      %p239 = scmp.eq.s32.totalorder %s23, 1
      %p240 = por %p238, %p239
      %p242 = scmp.ne.s32.totalorder %s227, %s241
      %p243 = scmp.eq.s32.totalorder %s23, 0
      %p244 = por %p242, %p243
      %s246 = sadd.s32 %s245, 1
      %p249 = scmp.eq.s32.totalorder %s17, 1
      %p250 = scmp.ne.s32.totalorder %s245, %s247
      %p251 = scmp.eq.s32.totalorder %s17, 0
      %p252 = por %p250, %p251
      %p253 = scmp.ne.s32.totalorder %s245, %s247
      %p254 = scmp.eq.s32.totalorder %s22, 1
      %p255 = por %p253, %p254
      %p256 = scmp.ne.s32.totalorder %s247, %s248
      %p257 = scmp.eq.s32.totalorder %s22, 0
      %p258 = por %p256, %p257
      %p259 = scmp.ne.s32.totalorder %s247, %s248
      %p260 = scmp.eq.s32.totalorder %s23, 1
      %p261 = por %p259, %p260
      %p263 = scmp.ne.s32.totalorder %s248, %s262
      %p264 = scmp.eq.s32.totalorder %s23, 0
      %p265 = por %p263, %p264
      %s266 = ssub.s32 %s17, %s24
      %p267 = scmp.eq.s32.totalorder %s266, 0
      %s269 = sadd.s32 %s268, 1
      %s270 = scalar_select %p267, %s268, %s269
      %p273 = pneg %p267
      %p274 = scmp.eq.s32.totalorder %s17, 1
      %p275 = por %p273, %p274
      %p276 = scmp.ne.s32.totalorder %s268, %s271
      %p277 = scmp.eq.s32.totalorder %s17, 0
      %p278 = por %p276, %p277
      %p279 = scmp.ne.s32.totalorder %s268, %s271
      %p280 = scmp.eq.s32.totalorder %s22, 1
      %p281 = por %p279, %p280
      %p282 = scmp.ne.s32.totalorder %s271, %s272
      %p283 = scmp.eq.s32.totalorder %s22, 0
      %p284 = por %p282, %p283
      %p285 = scmp.ne.s32.totalorder %s271, %s272
      %p286 = scmp.eq.s32.totalorder %s23, 1
      %p287 = por %p285, %p286
      %p289 = scmp.ne.s32.totalorder %s272, %s288
      %p290 = scmp.eq.s32.totalorder %s23, 0
      %p291 = por %p289, %p290
      %p292 = scmp.le.s32.totalorder 1, %s17
      %p293 = scmp.lt.s32.totalorder %s17, 3
      %p294 = pnand %p292, %p293
      %p295 = pneg %p294
      // Predicated region
      $region9: #{detrhoi_forward.1} parent=5 // pred_check
        _
      $region10: #{detrhoi_forward.1} parent=5 // pred_check_branch
        %297 = sbr.rel (%p294) target = $region12
      $region11: #{detrhoi_forward.1} parent=5 // pred_region
        %s298 = ssub.s32 %s17, 1
        // Predicated region
        $region13: #{detrhoi_forward.1} parent=11 // pred_check
          %p299 = pneg %p90
        $region14: #{detrhoi_forward.1} parent=11 // pred_check_branch
          %301 = sbr.rel (%p299) target = $region16
        $region15: #{detrhoi_forward.1} parent=11 // pred_region
          _
        $region16: #{detrhoi_forward.1} parent=11 // pred_fallthru
          _
        // Predicated region
        $region17: #{detrhoi_forward.1} parent=11 // pred_check
          %p302 = pneg %p111
        $region18: #{detrhoi_forward.1} parent=11 // pred_check_branch
          %304 = sbr.rel (%p302) target = $region20
        $region19: #{detrhoi_forward.1} parent=11 // pred_region
          _
        $region20: #{detrhoi_forward.1} parent=11 // pred_fallthru
          _
        // Predicated region
        $region21: #{detrhoi_forward.1} parent=11 // pred_check
          %p305 = pneg %p132
        $region22: #{detrhoi_forward.1} parent=11 // pred_check_branch
          %307 = sbr.rel (%p305) target = $region24
        $region23: #{detrhoi_forward.1} parent=11 // pred_region
          _
        $region24: #{detrhoi_forward.1} parent=11 // pred_fallthru
          _
        // Predicated region
        $region25: #{detrhoi_forward.1} parent=11 // pred_check
          %p308 = pneg %p153
        $region26: #{detrhoi_forward.1} parent=11 // pred_check_branch
          %310 = sbr.rel (%p308) target = $region28
        $region27: #{detrhoi_forward.1} parent=11 // pred_region
          _
        $region28: #{detrhoi_forward.1} parent=11 // pred_fallthru
          _
        // Predicated region
        $region29: #{detrhoi_forward.1} parent=11 // pred_check
          %p311 = pneg %p174
        $region30: #{detrhoi_forward.1} parent=11 // pred_check_branch
          %313 = sbr.rel (%p311) target = $region32
        $region31: #{detrhoi_forward.1} parent=11 // pred_region
          _
        $region32: #{detrhoi_forward.1} parent=11 // pred_fallthru
          _
        // Predicated region
        $region33: #{detrhoi_forward.1} parent=11 // pred_check
          %p314 = pneg %p195
        $region34: #{detrhoi_forward.1} parent=11 // pred_check_branch
          %316 = sbr.rel (%p314) target = $region36
        $region35: #{detrhoi_forward.1} parent=11 // pred_region
          _
        $region36: #{detrhoi_forward.1} parent=11 // pred_fallthru
          _
        // Predicated region
        $region37: #{detrhoi_forward.1} parent=11 // pred_check
          %p317 = pneg %p216
        $region38: #{detrhoi_forward.1} parent=11 // pred_check_branch
          %319 = sbr.rel (%p317) target = $region40
        $region39: #{detrhoi_forward.1} parent=11 // pred_region
          _
        $region40: #{detrhoi_forward.1} parent=11 // pred_fallthru
          _
        // Predicated region
        $region41: #{detrhoi_forward.1} parent=11 // pred_check
          %p320 = pneg %p237
        $region42: #{detrhoi_forward.1} parent=11 // pred_check_branch
          %322 = sbr.rel (%p320) target = $region44
        $region43: #{detrhoi_forward.1} parent=11 // pred_region
          _
        $region44: #{detrhoi_forward.1} parent=11 // pred_fallthru
          _
        // Predicated region
        $region45: #{detrhoi_forward.1} parent=11 // pred_check
          %p323 = pneg %p258
        $region46: #{detrhoi_forward.1} parent=11 // pred_check_branch
          %325 = sbr.rel (%p323) target = $region48
        $region47: #{detrhoi_forward.1} parent=11 // pred_region
          _
        $region48: #{detrhoi_forward.1} parent=11 // pred_fallthru
          _
      $region12: #{detrhoi_forward.1} parent=5 // pred_fallthru
        _
      %p326 = scmp.lt.s32.totalorder %s17, 2
      // Predicated region
      $region49: #{detrhoi_forward.1} parent=5 // pred_check
        %p327 = pneg %p326
      $region50: #{detrhoi_forward.1} parent=5 // pred_check_branch
        %329 = sbr.rel (%p327) target = $region52
      $region51: #{detrhoi_forward.1} parent=5 // pred_region
        // Predicated region
        $region53: #{detrhoi_forward.1} parent=51 // pred_check
          %p330 = pneg %p37
        $region54: #{detrhoi_forward.1} parent=51 // pred_check_branch
          %332 = sbr.rel (%p330) target = $region56
        $region55: #{detrhoi_forward.1} parent=51 // pred_region
          %p333 = scmp.lt.s32.totalorder %s17, 1
          %s334 = scalar_select %p333, %s17, 1
          %s335 = smul.addr %s334, 32
          %s336 = smul.addr %s335, 8
          %s337 = scalar_lea.vmem %s0, %s336
        $region56: #{detrhoi_forward.1} parent=51 // pred_fallthru
          _
        // Predicated region
        $region57: #{detrhoi_forward.1} parent=51 // pred_check
          %p338 = pneg %p63
        $region58: #{detrhoi_forward.1} parent=51 // pred_check_branch
          %340 = sbr.rel (%p338) target = $region60
        $region59: #{detrhoi_forward.1} parent=51 // pred_region
          %p341 = scmp.lt.s32.totalorder %s17, 1
          %s342 = scalar_select %p341, %s17, 1
          %s343 = smul.addr %s342, 32
          %s344 = smul.addr %s343, 8
          %s345 = scalar_lea.vmem %s1, %s344
        $region60: #{detrhoi_forward.1} parent=51 // pred_fallthru
          _
      $region52: #{detrhoi_forward.1} parent=5 // pred_fallthru
        _
      %p346 = scmp.le.s32.totalorder 1, %s17
      %p347 = scmp.lt.s32.totalorder %s17, 3
      %p348 = pnand %p346, %p347
      %p349 = pneg %p348
      // Predicated region
      $region61: #{detrhoi_forward.1} parent=5 // pred_check
        _
      $region62: #{detrhoi_forward.1} parent=5 // pred_check_branch
        %351 = sbr.rel (%p348) target = $region64
      $region63: #{detrhoi_forward.1} parent=5 // pred_region
        %s352 = ssub.s32 %s17, 1
        %p353 = scmp.lt.s32.totalorder %s22, 1
        %s354 = scalar_select %p353, %s22, 1
        %s355 = smul.addr %s354, 32
        %s356 = smul.addr %s355, 8
        %s357 = scalar_lea.vmem %s0, %s356
        %p358 = pneg %p43
        %p359 = pneg %p40
        %p360 = scmp.lt.s32.totalorder %s22, 1
        %s361 = scalar_select %p360, %s22, 1
        %s362 = smul.addr %s361, 32
        %s363 = smul.addr %s362, 8
        %s364 = scalar_lea.vmem %s1, %s363
        %p365 = pneg %p69
        %p366 = pneg %p66
        %p367 = pneg %p90
        %p368 = pneg %p87
        %p369 = pneg %p111
        %p370 = pneg %p108
        %p371 = pneg %p132
        %p372 = pneg %p129
        %p373 = pneg %p153
        %p374 = pneg %p150
        %p375 = pneg %p174
        %p376 = pneg %p171
        %p377 = pneg %p195
        %p378 = pneg %p192
        %p379 = pneg %p216
        %p380 = pneg %p213
        %p381 = pneg %p237
        %p382 = pneg %p234
        %p383 = pneg %p258
        %p384 = pneg %p255
        %p385 = pneg %p284
        %p386 = pneg %p281
        %s387 = sand.u32 %s271, 1
        %s388 = sand.u32 %s271, 1
        %s389 = smul.addr %s388, 16
        %s390 = scalar_lea.vmem [#allocation2], %s389
        %p391 = scmp.lt.s32.totalorder %s22, 1
        %s392 = scalar_select %p391, %s22, 1
        %s393 = smul.addr %s392, 32
        %s394 = smul.addr %s393, 8
        %s395 = scalar_lea.vmem %s0, %s394
        %p396 = scmp.lt.s32.totalorder %s22, 1
        %s397 = scalar_select %p396, %s22, 1
        %s398 = smul.addr %s397, 32
        %s399 = smul.addr %s398, 8
        %s400 = scalar_lea.vmem %s1, %s399
        %v401 = vld [vmem:[%s395] sm:$0xff]
        %v402 = vld [vmem:[%s395 + $0x8] sm:$0xff]
        %v403 = vld [vmem:[%s395 + $0x10] sm:$0xff]
        %v404 = vld [vmem:[%s395 + $0x18] sm:$0xff]
        %v405 = vld [vmem:[%s395 + $0x20] sm:$0xff]
        %v406 = vld [vmem:[%s395 + $0x28] sm:$0xff]
        %v407 = vld [vmem:[%s395 + $0x30] sm:$0xff]
        %v408 = vld [vmem:[%s395 + $0x38] sm:$0xff]
        %v409 = vld [vmem:[%s395 + $0x40] sm:$0xff]
        %v410 = vld [vmem:[%s395 + $0x48] sm:$0xff]
        %v411 = vld [vmem:[%s395 + $0x50] sm:$0xff]
        %v412 = vld [vmem:[%s395 + $0x58] sm:$0xff]
        %v413 = vld [vmem:[%s395 + $0x60] sm:$0xff]
        %v414 = vld [vmem:[%s395 + $0x68] sm:$0xff]
        %v415 = vld [vmem:[%s395 + $0x70] sm:$0xff]
        %v416 = vld [vmem:[%s395 + $0x78] sm:$0xff]
        %v417 = vld [vmem:[%s395 + $0x80] sm:$0xff]
        %v418 = vld [vmem:[%s395 + $0x88] sm:$0xff]
        %v419 = vld [vmem:[%s395 + $0x90] sm:$0xff]
        %v420 = vld [vmem:[%s395 + $0x98] sm:$0xff]
        %v421 = vld [vmem:[%s395 + $0xa0] sm:$0xff]
        %v422 = vld [vmem:[%s395 + $0xa8] sm:$0xff]
        %v423 = vld [vmem:[%s395 + $0xb0] sm:$0xff]
        %v424 = vld [vmem:[%s395 + $0xb8] sm:$0xff]
        %v425 = vld [vmem:[%s395 + $0xc0] sm:$0xff]
        %v426 = vld [vmem:[%s395 + $0xc8] sm:$0xff]
        %v427 = vld [vmem:[%s395 + $0xd0] sm:$0xff]
        %v428 = vld [vmem:[%s395 + $0xd8] sm:$0xff]
        %v429 = vld [vmem:[%s395 + $0xe0] sm:$0xff]
        %v430 = vld [vmem:[%s395 + $0xe8] sm:$0xff]
        %v431 = vld [vmem:[%s395 + $0xf0] sm:$0xff]
        %v432 = vld [vmem:[%s395 + $0xf8] sm:$0xff]
        %v433 = vld [vmem:[%s400] sm:$0xff]
        %v434 = vld [vmem:[%s400 + $0x8] sm:$0xff]
        %v435 = vld [vmem:[%s400 + $0x10] sm:$0xff]
        %v436 = vld [vmem:[%s400 + $0x18] sm:$0xff]
        %v437 = vld [vmem:[%s400 + $0x20] sm:$0xff]
        %v438 = vld [vmem:[%s400 + $0x28] sm:$0xff]
        %v439 = vld [vmem:[%s400 + $0x30] sm:$0xff]
        %v440 = vld [vmem:[%s400 + $0x38] sm:$0xff]
        %v441 = vld [vmem:[%s400 + $0x40] sm:$0xff]
        %v442 = vld [vmem:[%s400 + $0x48] sm:$0xff]
        %v443 = vld [vmem:[%s400 + $0x50] sm:$0xff]
        %v444 = vld [vmem:[%s400 + $0x58] sm:$0xff]
        %v445 = vld [vmem:[%s400 + $0x60] sm:$0xff]
        %v446 = vld [vmem:[%s400 + $0x68] sm:$0xff]
        %v447 = vld [vmem:[%s400 + $0x70] sm:$0xff]
        %v448 = vld [vmem:[%s400 + $0x78] sm:$0xff]
        %v449 = vld [vmem:[%s400 + $0x80] sm:$0xff]
        %v450 = vld [vmem:[%s400 + $0x88] sm:$0xff]
        %v451 = vld [vmem:[%s400 + $0x90] sm:$0xff]
        %v452 = vld [vmem:[%s400 + $0x98] sm:$0xff]
        %v453 = vld [vmem:[%s400 + $0xa0] sm:$0xff]
        %v454 = vld [vmem:[%s400 + $0xa8] sm:$0xff]
        %v455 = vld [vmem:[%s400 + $0xb0] sm:$0xff]
        %v456 = vld [vmem:[%s400 + $0xb8] sm:$0xff]
        %v457 = vld [vmem:[%s400 + $0xc0] sm:$0xff]
        %v458 = vld [vmem:[%s400 + $0xc8] sm:$0xff]
        %v459 = vld [vmem:[%s400 + $0xd0] sm:$0xff]
        %v460 = vld [vmem:[%s400 + $0xd8] sm:$0xff]
        %v461 = vld [vmem:[%s400 + $0xe0] sm:$0xff]
        %v462 = vld [vmem:[%s400 + $0xe8] sm:$0xff]
        %v463 = vld [vmem:[%s400 + $0xf0] sm:$0xff]
        %v464 = vld [vmem:[%s400 + $0xf8] sm:$0xff]
        %v465 = vld [vmem:[%s3] sm:$0x1]
        %v466 = vld [vmem:[%s2] sm:$0x1]
        %468 = vset.pattern.permute.xlu0 0
        %469 = vperm.xlu0 %468, %v401
        %v470 = vpop.permute.xlu0 %469
        %473 = vset.pattern.permute.xlu0 0
        %474 = vperm.xlu0 %473, %v402
        %v475 = vpop.permute.xlu0 %474
        %478 = vset.pattern.permute.xlu0 0
        %479 = vperm.xlu0 %478, %v403
        %v480 = vpop.permute.xlu0 %479
        %483 = vset.pattern.permute.xlu0 0
        %484 = vperm.xlu0 %483, %v404
        %v485 = vpop.permute.xlu0 %484
        %488 = vset.pattern.permute.xlu0 0
        %489 = vperm.xlu0 %488, %v405
        %v490 = vpop.permute.xlu0 %489
        %493 = vset.pattern.permute.xlu0 0
        %494 = vperm.xlu0 %493, %v406
        %v495 = vpop.permute.xlu0 %494
        %498 = vset.pattern.permute.xlu0 0
        %499 = vperm.xlu0 %498, %v407
        %v500 = vpop.permute.xlu0 %499
        %503 = vset.pattern.permute.xlu0 0
        %504 = vperm.xlu0 %503, %v408
        %v505 = vpop.permute.xlu0 %504
        %508 = vset.pattern.permute.xlu0 0
        %509 = vperm.xlu0 %508, %v409
        %v510 = vpop.permute.xlu0 %509
        %513 = vset.pattern.permute.xlu0 0
        %514 = vperm.xlu0 %513, %v410
        %v515 = vpop.permute.xlu0 %514
        %518 = vset.pattern.permute.xlu0 0
        %519 = vperm.xlu0 %518, %v411
        %v520 = vpop.permute.xlu0 %519
        %523 = vset.pattern.permute.xlu0 0
        %524 = vperm.xlu0 %523, %v412
        %v525 = vpop.permute.xlu0 %524
        %528 = vset.pattern.permute.xlu0 0
        %529 = vperm.xlu0 %528, %v413
        %v530 = vpop.permute.xlu0 %529
        %533 = vset.pattern.permute.xlu0 0
        %534 = vperm.xlu0 %533, %v414
        %v535 = vpop.permute.xlu0 %534
        %538 = vset.pattern.permute.xlu0 0
        %539 = vperm.xlu0 %538, %v415
        %v540 = vpop.permute.xlu0 %539
        %543 = vset.pattern.permute.xlu0 0
        %544 = vperm.xlu0 %543, %v416
        %v545 = vpop.permute.xlu0 %544
        %548 = vset.pattern.permute.xlu0 0
        %549 = vperm.xlu0 %548, %v417
        %v550 = vpop.permute.xlu0 %549
        %553 = vset.pattern.permute.xlu0 0
        %554 = vperm.xlu0 %553, %v418
        %v555 = vpop.permute.xlu0 %554
        %558 = vset.pattern.permute.xlu0 0
        %559 = vperm.xlu0 %558, %v419
        %v560 = vpop.permute.xlu0 %559
        %563 = vset.pattern.permute.xlu0 0
        %564 = vperm.xlu0 %563, %v420
        %v565 = vpop.permute.xlu0 %564
        %568 = vset.pattern.permute.xlu0 0
        %569 = vperm.xlu0 %568, %v421
        %v570 = vpop.permute.xlu0 %569
        %573 = vset.pattern.permute.xlu0 0
        %574 = vperm.xlu0 %573, %v422
        %v575 = vpop.permute.xlu0 %574
        %578 = vset.pattern.permute.xlu0 0
        %579 = vperm.xlu0 %578, %v423
        %v580 = vpop.permute.xlu0 %579
        %583 = vset.pattern.permute.xlu0 0
        %584 = vperm.xlu0 %583, %v424
        %v585 = vpop.permute.xlu0 %584
        %588 = vset.pattern.permute.xlu0 0
        %589 = vperm.xlu0 %588, %v425
        %v590 = vpop.permute.xlu0 %589
        %593 = vset.pattern.permute.xlu0 0
        %594 = vperm.xlu0 %593, %v426
        %v595 = vpop.permute.xlu0 %594
        %598 = vset.pattern.permute.xlu0 0
        %599 = vperm.xlu0 %598, %v427
        %v600 = vpop.permute.xlu0 %599
        %603 = vset.pattern.permute.xlu0 0
        %604 = vperm.xlu0 %603, %v428
        %v605 = vpop.permute.xlu0 %604
        %608 = vset.pattern.permute.xlu0 0
        %609 = vperm.xlu0 %608, %v429
        %v610 = vpop.permute.xlu0 %609
        %613 = vset.pattern.permute.xlu0 0
        %614 = vperm.xlu0 %613, %v430
        %v615 = vpop.permute.xlu0 %614
        %618 = vset.pattern.permute.xlu0 0
        %619 = vperm.xlu0 %618, %v431
        %v620 = vpop.permute.xlu0 %619
        %623 = vset.pattern.permute.xlu0 0
        %624 = vperm.xlu0 %623, %v432
        %v625 = vpop.permute.xlu0 %624
        %v627 = vperm.slane %v466, 0
        %v628 = vmul.f32 %v470, %v627
        %v629 = vmul.f32 %v475, %v627
        %v630 = vmul.f32 %v480, %v627
        %v631 = vmul.f32 %v485, %v627
        %v632 = vmul.f32 %v490, %v627
        %v633 = vmul.f32 %v495, %v627
        %v634 = vmul.f32 %v500, %v627
        %v635 = vmul.f32 %v505, %v627
        %v636 = vmul.f32 %v510, %v627
        %v637 = vmul.f32 %v515, %v627
        %v638 = vmul.f32 %v520, %v627
        %v639 = vmul.f32 %v525, %v627
        %v640 = vmul.f32 %v530, %v627
        %v641 = vmul.f32 %v535, %v627
        %v642 = vmul.f32 %v540, %v627
        %v643 = vmul.f32 %v545, %v627
        %v644 = vmul.f32 %v550, %v627
        %v645 = vmul.f32 %v555, %v627
        %v646 = vmul.f32 %v560, %v627
        %v647 = vmul.f32 %v565, %v627
        %v648 = vmul.f32 %v570, %v627
        %v649 = vmul.f32 %v575, %v627
        %v650 = vmul.f32 %v580, %v627
        %v651 = vmul.f32 %v585, %v627
        %v652 = vmul.f32 %v590, %v627
        %v653 = vmul.f32 %v595, %v627
        %v654 = vmul.f32 %v600, %v627
        %v655 = vmul.f32 %v605, %v627
        %v656 = vmul.f32 %v610, %v627
        %v657 = vmul.f32 %v615, %v627
        %v658 = vmul.f32 %v620, %v627
        %v659 = vmul.f32 %v625, %v627
        %v661 = vperm.slane %v465, 0
        %v663 = vadd.f32 %v661, %v628
        %v664 = vadd.f32 %v661, %v629
        %v665 = vadd.f32 %v661, %v630
        %v666 = vadd.f32 %v661, %v631
        %v667 = vadd.f32 %v661, %v632
        %v668 = vadd.f32 %v661, %v633
        %v669 = vadd.f32 %v661, %v634
        %v670 = vadd.f32 %v661, %v635
        %v671 = vadd.f32 %v661, %v636
        %v672 = vadd.f32 %v661, %v637
        %v673 = vadd.f32 %v661, %v638
        %v674 = vadd.f32 %v661, %v639
        %v675 = vadd.f32 %v661, %v640
        %v676 = vadd.f32 %v661, %v641
        %v677 = vadd.f32 %v661, %v642
        %v678 = vadd.f32 %v661, %v643
        %v679 = vadd.f32 %v661, %v644
        %v680 = vadd.f32 %v661, %v645
        %v681 = vadd.f32 %v661, %v646
        %v682 = vadd.f32 %v661, %v647
        %v683 = vadd.f32 %v661, %v648
        %v684 = vadd.f32 %v661, %v649
        %v685 = vadd.f32 %v661, %v650
        %v686 = vadd.f32 %v661, %v651
        %v687 = vadd.f32 %v661, %v652
        %v688 = vadd.f32 %v661, %v653
        %v689 = vadd.f32 %v661, %v654
        %v690 = vadd.f32 %v661, %v655
        %v691 = vadd.f32 %v661, %v656
        %v692 = vadd.f32 %v661, %v657
        %v693 = vadd.f32 %v661, %v658
        %v694 = vadd.f32 %v661, %v659
        %v695 = vld [vmem:[%s2 + $0x1] sm:$0x1]
        %696 = vset.pattern.permute.xlu0 1
        %697 = vperm.xlu0 %696, %v401
        %v698 = vpop.permute.xlu0 %697
        %700 = vset.pattern.permute.xlu0 1
        %701 = vperm.xlu0 %700, %v402
        %v702 = vpop.permute.xlu0 %701
        %704 = vset.pattern.permute.xlu0 1
        %705 = vperm.xlu0 %704, %v403
        %v706 = vpop.permute.xlu0 %705
        %708 = vset.pattern.permute.xlu0 1
        %709 = vperm.xlu0 %708, %v404
        %v710 = vpop.permute.xlu0 %709
        %712 = vset.pattern.permute.xlu0 1
        %713 = vperm.xlu0 %712, %v405
        %v714 = vpop.permute.xlu0 %713
        %716 = vset.pattern.permute.xlu0 1
        %717 = vperm.xlu0 %716, %v406
        %v718 = vpop.permute.xlu0 %717
        %720 = vset.pattern.permute.xlu0 1
        %721 = vperm.xlu0 %720, %v407
        %v722 = vpop.permute.xlu0 %721
        %724 = vset.pattern.permute.xlu0 1
        %725 = vperm.xlu0 %724, %v408
        %v726 = vpop.permute.xlu0 %725
        %728 = vset.pattern.permute.xlu0 1
        %729 = vperm.xlu0 %728, %v409
        %v730 = vpop.permute.xlu0 %729
        %732 = vset.pattern.permute.xlu0 1
        %733 = vperm.xlu0 %732, %v410
        %v734 = vpop.permute.xlu0 %733
        %736 = vset.pattern.permute.xlu0 1
        %737 = vperm.xlu0 %736, %v411
        %v738 = vpop.permute.xlu0 %737
        %740 = vset.pattern.permute.xlu0 1
        %741 = vperm.xlu0 %740, %v412
        %v742 = vpop.permute.xlu0 %741
        %744 = vset.pattern.permute.xlu0 1
        %745 = vperm.xlu0 %744, %v413
        %v746 = vpop.permute.xlu0 %745
        %748 = vset.pattern.permute.xlu0 1
        %749 = vperm.xlu0 %748, %v414
        %v750 = vpop.permute.xlu0 %749
        %752 = vset.pattern.permute.xlu0 1
        %753 = vperm.xlu0 %752, %v415
        %v754 = vpop.permute.xlu0 %753
        %756 = vset.pattern.permute.xlu0 1
        %757 = vperm.xlu0 %756, %v416
        %v758 = vpop.permute.xlu0 %757
        %760 = vset.pattern.permute.xlu0 1
        %761 = vperm.xlu0 %760, %v417
        %v762 = vpop.permute.xlu0 %761
        %764 = vset.pattern.permute.xlu0 1
        %765 = vperm.xlu0 %764, %v418
        %v766 = vpop.permute.xlu0 %765
        %768 = vset.pattern.permute.xlu0 1
        %769 = vperm.xlu0 %768, %v419
        %v770 = vpop.permute.xlu0 %769
        %772 = vset.pattern.permute.xlu0 1
        %773 = vperm.xlu0 %772, %v420
        %v774 = vpop.permute.xlu0 %773
        %776 = vset.pattern.permute.xlu0 1
        %777 = vperm.xlu0 %776, %v421
        %v778 = vpop.permute.xlu0 %777
        %780 = vset.pattern.permute.xlu0 1
        %781 = vperm.xlu0 %780, %v422
        %v782 = vpop.permute.xlu0 %781
        %784 = vset.pattern.permute.xlu0 1
        %785 = vperm.xlu0 %784, %v423
        %v786 = vpop.permute.xlu0 %785
        %788 = vset.pattern.permute.xlu0 1
        %789 = vperm.xlu0 %788, %v424
        %v790 = vpop.permute.xlu0 %789
        %792 = vset.pattern.permute.xlu0 1
        %793 = vperm.xlu0 %792, %v425
        %v794 = vpop.permute.xlu0 %793
        %796 = vset.pattern.permute.xlu0 1
        %797 = vperm.xlu0 %796, %v426
        %v798 = vpop.permute.xlu0 %797
        %800 = vset.pattern.permute.xlu0 1
        %801 = vperm.xlu0 %800, %v427
        %v802 = vpop.permute.xlu0 %801
        %804 = vset.pattern.permute.xlu0 1
        %805 = vperm.xlu0 %804, %v428
        %v806 = vpop.permute.xlu0 %805
        %808 = vset.pattern.permute.xlu0 1
        %809 = vperm.xlu0 %808, %v429
        %v810 = vpop.permute.xlu0 %809
        %812 = vset.pattern.permute.xlu0 1
        %813 = vperm.xlu0 %812, %v430
        %v814 = vpop.permute.xlu0 %813
        %816 = vset.pattern.permute.xlu0 1
        %817 = vperm.xlu0 %816, %v431
        %v818 = vpop.permute.xlu0 %817
        %820 = vset.pattern.permute.xlu0 1
        %821 = vperm.xlu0 %820, %v432
        %v822 = vpop.permute.xlu0 %821
        %v824 = vperm.slane %v695, 0
        %v825 = vmul.f32 %v698, %v824
        %v826 = vmul.f32 %v702, %v824
        %v827 = vmul.f32 %v706, %v824
        %v828 = vmul.f32 %v710, %v824
        %v829 = vmul.f32 %v714, %v824
        %v830 = vmul.f32 %v718, %v824
        %v831 = vmul.f32 %v722, %v824
        %v832 = vmul.f32 %v726, %v824
        %v833 = vmul.f32 %v730, %v824
        %v834 = vmul.f32 %v734, %v824
        %v835 = vmul.f32 %v738, %v824
        %v836 = vmul.f32 %v742, %v824
        %v837 = vmul.f32 %v746, %v824
        %v838 = vmul.f32 %v750, %v824
        %v839 = vmul.f32 %v754, %v824
        %v840 = vmul.f32 %v758, %v824
        %v841 = vmul.f32 %v762, %v824
        %v842 = vmul.f32 %v766, %v824
        %v843 = vmul.f32 %v770, %v824
        %v844 = vmul.f32 %v774, %v824
        %v845 = vmul.f32 %v778, %v824
        %v846 = vmul.f32 %v782, %v824
        %v847 = vmul.f32 %v786, %v824
        %v848 = vmul.f32 %v790, %v824
        %v849 = vmul.f32 %v794, %v824
        %v850 = vmul.f32 %v798, %v824
        %v851 = vmul.f32 %v802, %v824
        %v852 = vmul.f32 %v806, %v824
        %v853 = vmul.f32 %v810, %v824
        %v854 = vmul.f32 %v814, %v824
        %v855 = vmul.f32 %v818, %v824
        %v856 = vmul.f32 %v822, %v824
        %v857 = vadd.f32 %v663, %v825
        %v858 = vadd.f32 %v664, %v826
        %v859 = vadd.f32 %v665, %v827
        %v860 = vadd.f32 %v666, %v828
        %v861 = vadd.f32 %v667, %v829
        %v862 = vadd.f32 %v668, %v830
        %v863 = vadd.f32 %v669, %v831
        %v864 = vadd.f32 %v670, %v832
        %v865 = vadd.f32 %v671, %v833
        %v866 = vadd.f32 %v672, %v834
        %v867 = vadd.f32 %v673, %v835
        %v868 = vadd.f32 %v674, %v836
        %v869 = vadd.f32 %v675, %v837
        %v870 = vadd.f32 %v676, %v838
        %v871 = vadd.f32 %v677, %v839
        %v872 = vadd.f32 %v678, %v840
        %v873 = vadd.f32 %v679, %v841
        %v874 = vadd.f32 %v680, %v842
        %v875 = vadd.f32 %v681, %v843
        %v876 = vadd.f32 %v682, %v844
        %v877 = vadd.f32 %v683, %v845
        %v878 = vadd.f32 %v684, %v846
        %v879 = vadd.f32 %v685, %v847
        %v880 = vadd.f32 %v686, %v848
        %v881 = vadd.f32 %v687, %v849
        %v882 = vadd.f32 %v688, %v850
        %v883 = vadd.f32 %v689, %v851
        %v884 = vadd.f32 %v690, %v852
        %v885 = vadd.f32 %v691, %v853
        %v886 = vadd.f32 %v692, %v854
        %v887 = vadd.f32 %v693, %v855
        %v888 = vadd.f32 %v694, %v856
        %v889 = vld [vmem:[%s2 + $0x2] sm:$0x1]
        %890 = vset.pattern.permute.xlu0 2
        %891 = vperm.xlu0 %890, %v401
        %v892 = vpop.permute.xlu0 %891
        %894 = vset.pattern.permute.xlu0 2
        %895 = vperm.xlu0 %894, %v402
        %v896 = vpop.permute.xlu0 %895
        %898 = vset.pattern.permute.xlu0 2
        %899 = vperm.xlu0 %898, %v403
        %v900 = vpop.permute.xlu0 %899
        %902 = vset.pattern.permute.xlu0 2
        %903 = vperm.xlu0 %902, %v404
        %v904 = vpop.permute.xlu0 %903
        %906 = vset.pattern.permute.xlu0 2
        %907 = vperm.xlu0 %906, %v405
        %v908 = vpop.permute.xlu0 %907
        %910 = vset.pattern.permute.xlu0 2
        %911 = vperm.xlu0 %910, %v406
        %v912 = vpop.permute.xlu0 %911
        %914 = vset.pattern.permute.xlu0 2
        %915 = vperm.xlu0 %914, %v407
        %v916 = vpop.permute.xlu0 %915
        %918 = vset.pattern.permute.xlu0 2
        %919 = vperm.xlu0 %918, %v408
        %v920 = vpop.permute.xlu0 %919
        %922 = vset.pattern.permute.xlu0 2
        %923 = vperm.xlu0 %922, %v409
        %v924 = vpop.permute.xlu0 %923
        %926 = vset.pattern.permute.xlu0 2
        %927 = vperm.xlu0 %926, %v410
        %v928 = vpop.permute.xlu0 %927
        %930 = vset.pattern.permute.xlu0 2
        %931 = vperm.xlu0 %930, %v411
        %v932 = vpop.permute.xlu0 %931
        %934 = vset.pattern.permute.xlu0 2
        %935 = vperm.xlu0 %934, %v412
        %v936 = vpop.permute.xlu0 %935
        %938 = vset.pattern.permute.xlu0 2
        %939 = vperm.xlu0 %938, %v413
        %v940 = vpop.permute.xlu0 %939
        %942 = vset.pattern.permute.xlu0 2
        %943 = vperm.xlu0 %942, %v414
        %v944 = vpop.permute.xlu0 %943
        %946 = vset.pattern.permute.xlu0 2
        %947 = vperm.xlu0 %946, %v415
        %v948 = vpop.permute.xlu0 %947
        %950 = vset.pattern.permute.xlu0 2
        %951 = vperm.xlu0 %950, %v416
        %v952 = vpop.permute.xlu0 %951
        %954 = vset.pattern.permute.xlu0 2
        %955 = vperm.xlu0 %954, %v417
        %v956 = vpop.permute.xlu0 %955
        %958 = vset.pattern.permute.xlu0 2
        %959 = vperm.xlu0 %958, %v418
        %v960 = vpop.permute.xlu0 %959
        %962 = vset.pattern.permute.xlu0 2
        %963 = vperm.xlu0 %962, %v419
        %v964 = vpop.permute.xlu0 %963
        %966 = vset.pattern.permute.xlu0 2
        %967 = vperm.xlu0 %966, %v420
        %v968 = vpop.permute.xlu0 %967
        %970 = vset.pattern.permute.xlu0 2
        %971 = vperm.xlu0 %970, %v421
        %v972 = vpop.permute.xlu0 %971
        %974 = vset.pattern.permute.xlu0 2
        %975 = vperm.xlu0 %974, %v422
        %v976 = vpop.permute.xlu0 %975
        %978 = vset.pattern.permute.xlu0 2
        %979 = vperm.xlu0 %978, %v423
        %v980 = vpop.permute.xlu0 %979
        %982 = vset.pattern.permute.xlu0 2
        %983 = vperm.xlu0 %982, %v424
        %v984 = vpop.permute.xlu0 %983
        %986 = vset.pattern.permute.xlu0 2
        %987 = vperm.xlu0 %986, %v425
        %v988 = vpop.permute.xlu0 %987
        %990 = vset.pattern.permute.xlu0 2
        %991 = vperm.xlu0 %990, %v426
        %v992 = vpop.permute.xlu0 %991
        %994 = vset.pattern.permute.xlu0 2
        %995 = vperm.xlu0 %994, %v427
        %v996 = vpop.permute.xlu0 %995
        %998 = vset.pattern.permute.xlu0 2
        %999 = vperm.xlu0 %998, %v428
        %v1000 = vpop.permute.xlu0 %999
        %1002 = vset.pattern.permute.xlu0 2
        %1003 = vperm.xlu0 %1002, %v429
        %v1004 = vpop.permute.xlu0 %1003
        %1006 = vset.pattern.permute.xlu0 2
        %1007 = vperm.xlu0 %1006, %v430
        %v1008 = vpop.permute.xlu0 %1007
        %1010 = vset.pattern.permute.xlu0 2
        %1011 = vperm.xlu0 %1010, %v431
        %v1012 = vpop.permute.xlu0 %1011
        %1014 = vset.pattern.permute.xlu0 2
        %1015 = vperm.xlu0 %1014, %v432
        %v1016 = vpop.permute.xlu0 %1015
        %v1018 = vperm.slane %v889, 0
        %v1019 = vmul.f32 %v892, %v1018
        %v1020 = vmul.f32 %v896, %v1018
        %v1021 = vmul.f32 %v900, %v1018
        %v1022 = vmul.f32 %v904, %v1018
        %v1023 = vmul.f32 %v908, %v1018
        %v1024 = vmul.f32 %v912, %v1018
        %v1025 = vmul.f32 %v916, %v1018
        %v1026 = vmul.f32 %v920, %v1018
        %v1027 = vmul.f32 %v924, %v1018
        %v1028 = vmul.f32 %v928, %v1018
        %v1029 = vmul.f32 %v932, %v1018
        %v1030 = vmul.f32 %v936, %v1018
        %v1031 = vmul.f32 %v940, %v1018
        %v1032 = vmul.f32 %v944, %v1018
        %v1033 = vmul.f32 %v948, %v1018
        %v1034 = vmul.f32 %v952, %v1018
        %v1035 = vmul.f32 %v956, %v1018
        %v1036 = vmul.f32 %v960, %v1018
        %v1037 = vmul.f32 %v964, %v1018
        %v1038 = vmul.f32 %v968, %v1018
        %v1039 = vmul.f32 %v972, %v1018
        %v1040 = vmul.f32 %v976, %v1018
        %v1041 = vmul.f32 %v980, %v1018
        %v1042 = vmul.f32 %v984, %v1018
        %v1043 = vmul.f32 %v988, %v1018
        %v1044 = vmul.f32 %v992, %v1018
        %v1045 = vmul.f32 %v996, %v1018
        %v1046 = vmul.f32 %v1000, %v1018
        %v1047 = vmul.f32 %v1004, %v1018
        %v1048 = vmul.f32 %v1008, %v1018
        %v1049 = vmul.f32 %v1012, %v1018
        %v1050 = vmul.f32 %v1016, %v1018
        %v1051 = vadd.f32 %v857, %v1019
        %v1052 = vadd.f32 %v858, %v1020
        %v1053 = vadd.f32 %v859, %v1021
        %v1054 = vadd.f32 %v860, %v1022
        %v1055 = vadd.f32 %v861, %v1023
        %v1056 = vadd.f32 %v862, %v1024
        %v1057 = vadd.f32 %v863, %v1025
        %v1058 = vadd.f32 %v864, %v1026
        %v1059 = vadd.f32 %v865, %v1027
        %v1060 = vadd.f32 %v866, %v1028
        %v1061 = vadd.f32 %v867, %v1029
        %v1062 = vadd.f32 %v868, %v1030
        %v1063 = vadd.f32 %v869, %v1031
        %v1064 = vadd.f32 %v870, %v1032
        %v1065 = vadd.f32 %v871, %v1033
        %v1066 = vadd.f32 %v872, %v1034
        %v1067 = vadd.f32 %v873, %v1035
        %v1068 = vadd.f32 %v874, %v1036
        %v1069 = vadd.f32 %v875, %v1037
        %v1070 = vadd.f32 %v876, %v1038
        %v1071 = vadd.f32 %v877, %v1039
        %v1072 = vadd.f32 %v878, %v1040
        %v1073 = vadd.f32 %v879, %v1041
        %v1074 = vadd.f32 %v880, %v1042
        %v1075 = vadd.f32 %v881, %v1043
        %v1076 = vadd.f32 %v882, %v1044
        %v1077 = vadd.f32 %v883, %v1045
        %v1078 = vadd.f32 %v884, %v1046
        %v1079 = vadd.f32 %v885, %v1047
        %v1080 = vadd.f32 %v886, %v1048
        %v1081 = vadd.f32 %v887, %v1049
        %v1082 = vadd.f32 %v888, %v1050
        %v1083 = vadd.f32 %v1051, %v433
        %v1084 = vadd.f32 %v1052, %v434
        %v1085 = vadd.f32 %v1053, %v435
        %v1086 = vadd.f32 %v1054, %v436
        %v1087 = vadd.f32 %v1055, %v437
        %v1088 = vadd.f32 %v1056, %v438
        %v1089 = vadd.f32 %v1057, %v439
        %v1090 = vadd.f32 %v1058, %v440
        %v1091 = vadd.f32 %v1059, %v441
        %v1092 = vadd.f32 %v1060, %v442
        %v1093 = vadd.f32 %v1061, %v443
        %v1094 = vadd.f32 %v1062, %v444
        %v1095 = vadd.f32 %v1063, %v445
        %v1096 = vadd.f32 %v1064, %v446
        %v1097 = vadd.f32 %v1065, %v447
        %v1098 = vadd.f32 %v1066, %v448
        %v1099 = vadd.f32 %v1067, %v449
        %v1100 = vadd.f32 %v1068, %v450
        %v1101 = vadd.f32 %v1069, %v451
        %v1102 = vadd.f32 %v1070, %v452
        %v1103 = vadd.f32 %v1071, %v453
        %v1104 = vadd.f32 %v1072, %v454
        %v1105 = vadd.f32 %v1073, %v455
        %v1106 = vadd.f32 %v1074, %v456
        %v1107 = vadd.f32 %v1075, %v457
        %v1108 = vadd.f32 %v1076, %v458
        %v1109 = vadd.f32 %v1077, %v459
        %v1110 = vadd.f32 %v1078, %v460
        %v1111 = vadd.f32 %v1079, %v461
        %v1112 = vadd.f32 %v1080, %v462
        %v1113 = vadd.f32 %v1081, %v463
        %v1114 = vadd.f32 %v1082, %v464
        %v1115 = vld [vmem:[%s4] sm:$0xff]
        %v1116 = vadd.f32 %v1115, 0.0
        %vm1117 = vcmask 261120
        %v1119 = vsel %vm1117, %v1116, 0
        %v1122 = vsel %vm1117, %v1083, 0
        %v1125 = vsel %vm1117, %v1084, 0
        %v1128 = vsel %vm1117, %v1085, 0
        %v1131 = vsel %vm1117, %v1086, 0
        %v1134 = vsel %vm1117, %v1087, 0
        %v1137 = vsel %vm1117, %v1088, 0
        %v1140 = vsel %vm1117, %v1089, 0
        %v1143 = vsel %vm1117, %v1090, 0
        %v1146 = vsel %vm1117, %v1091, 0
        %v1149 = vsel %vm1117, %v1092, 0
        %v1152 = vsel %vm1117, %v1093, 0
        %v1155 = vsel %vm1117, %v1094, 0
        %v1158 = vsel %vm1117, %v1095, 0
        %v1161 = vsel %vm1117, %v1096, 0
        %v1164 = vsel %vm1117, %v1097, 0
        %v1167 = vsel %vm1117, %v1098, 0
        %v1170 = vsel %vm1117, %v1099, 0
        %v1173 = vsel %vm1117, %v1100, 0
        %v1176 = vsel %vm1117, %v1101, 0
        %v1179 = vsel %vm1117, %v1102, 0
        %v1182 = vsel %vm1117, %v1103, 0
        %v1185 = vsel %vm1117, %v1104, 0
        %v1188 = vsel %vm1117, %v1105, 0
        %v1191 = vsel %vm1117, %v1106, 0
        %v1194 = vsel %vm1117, %v1107, 0
        %v1197 = vsel %vm1117, %v1108, 0
        %v1200 = vsel %vm1117, %v1109, 0
        %v1203 = vsel %vm1117, %v1110, 0
        %v1206 = vsel %vm1117, %v1111, 0
        %v1209 = vsel %vm1117, %v1112, 0
        %v1212 = vsel %vm1117, %v1113, 0
        %v1215 = vsel %vm1117, %v1114, 0
        %1217 = vmatpush.xpose.msra.mxu0 %v1167
        %1218 = vmatpush.xpose.msra.mxu0 %v1164
        %1219 = vmatpush.xpose.msra.mxu0 %v1161
        %1220 = vmatpush.xpose.msra.mxu0 %v1158
        %1221 = vmatpush.xpose.msra.mxu0 %v1155
        %1222 = vmatpush.xpose.msra.mxu0 %v1152
        %1223 = vmatpush.xpose.msra.mxu0 %v1149
        %1224 = vmatpush.xpose.msra.mxu0 %v1146
        %1225 = vmatpush.xpose.msra.mxu0 %v1143
        %1226 = vmatpush.xpose.msra.mxu0 %v1140
        %1227 = vmatpush.xpose.msra.mxu0 %v1137
        %1228 = vmatpush.xpose.msra.mxu0 %v1134
        %1229 = vmatpush.xpose.msra.mxu0 %v1131
        %1230 = vmatpush.xpose.msra.mxu0 %v1128
        %1231 = vmatpush.xpose.msra.mxu0 %v1125
        %1232 = vmatpush.xpose.msra.mxu0 %v1122
        %1233 = vmatmul.f32.gmra.mxu0 %v1119
        %v1234 = vpop.f32.mrf.mxu0
        %v1235 = vadd.f32 0.0, %v1234
        %1236 = vdwg.mxu0
        %1237 = vmatpush.xpose.msra.mxu0 %v1215
        %1238 = vmatpush.xpose.msra.mxu0 %v1212
        %1239 = vmatpush.xpose.msra.mxu0 %v1209
        %1240 = vmatpush.xpose.msra.mxu0 %v1206
        %1241 = vmatpush.xpose.msra.mxu0 %v1203
        %1242 = vmatpush.xpose.msra.mxu0 %v1200
        %1243 = vmatpush.xpose.msra.mxu0 %v1197
        %1244 = vmatpush.xpose.msra.mxu0 %v1194
        %1245 = vmatpush.xpose.msra.mxu0 %v1191
        %1246 = vmatpush.xpose.msra.mxu0 %v1188
        %1247 = vmatpush.xpose.msra.mxu0 %v1185
        %1248 = vmatpush.xpose.msra.mxu0 %v1182
        %1249 = vmatpush.xpose.msra.mxu0 %v1179
        %1250 = vmatpush.xpose.msra.mxu0 %v1176
        %1251 = vmatpush.xpose.msra.mxu0 %v1173
        %1252 = vmatpush.xpose.msra.mxu0 %v1170
        %1253 = vmatmul.f32.gmra.mxu0 %v1119
        %v1254 = vpop.f32.mrf.mxu0
        %v1255 = vadd.f32 0.0, %v1254
        %1256 = vdwg.mxu0
        %v1257 = vmul.f32 %v1235, 0.17677669
        %v1258 = vmul.f32 %v1255, 0.17677669
        %v1259 = vmax.f32 %v1257, %v1258
        %1260 = vmax.xlane.f32.xlu0 %v1259
        %v1261 = vpop.xlane.xlu0 %1260
        %v1262 = vsub.f32 %v1257, %v1261
        %v1263 = vsub.f32 %v1258, %v1261
        %v1264 = vmul.f32 %v1262, 1.442695
        %v1265 = vpow.pop %v1264
        %v1266 = vmul.f32 %v1263, 1.442695
        %v1267 = vpow.pop %v1266
        %v1268 = vadd.f32 %v1265, %v1267
        %1269 = vadd.xlane.f32.xlu0 %v1268
        %v1270 = vpop.xlane.xlu0 %1269
        %v1271 = vrcp.pop %v1270
        %v1272 = vmul.f32 %v1270, %v1271
        %v1273 = vsub.f32 1.0, %v1272
        %v1274 = vmul.f32 %v1271, %v1273
        %v1275 = vadd.f32 %v1271, %v1274
        %vm1276 = vweird.f32 %v1270
        %vm1277 = vweird.f32 %v1271
        %vm1278 = vmor %vm1276, %vm1277
        %v1279 = vsel %vm1278, %v1271, %v1275
        %v1280 = vand.u32 2147483647, %v1270
        %vm1281 = vcmp.eq.f32.partialorder %v1280, 8.507059e+37
        %v1282 = vand.u32 %v1270, 2147483648
        %v1283 = vor.u32 1.1754944e-38, %v1282
        %v1284 = vsel %vm1281, %v1283, %v1279
        %v1285 = vmul.f32 %v1265, %v1284
        %v1286 = vmul.f32 %v1267, %v1284
        %1287 = vmatpush.msra.mxu0 %v1066
        %1288 = vmatpush.msra.mxu0 %v1065
        %1289 = vmatpush.msra.mxu0 %v1064
        %1290 = vmatpush.msra.mxu0 %v1063
        %1291 = vmatpush.msra.mxu0 %v1062
        %1292 = vmatpush.msra.mxu0 %v1061
        %1293 = vmatpush.msra.mxu0 %v1060
        %1294 = vmatpush.msra.mxu0 %v1059
        %1295 = vmatpush.msra.mxu0 %v1058
        %1296 = vmatpush.msra.mxu0 %v1057
        %1297 = vmatpush.msra.mxu0 %v1056
        %1298 = vmatpush.msra.mxu0 %v1055
        %1299 = vmatpush.msra.mxu0 %v1054
        %1300 = vmatpush.msra.mxu0 %v1053
        %1301 = vmatpush.msra.mxu0 %v1052
        %1302 = vmatpush.msra.mxu0 %v1051
        %1303 = vmatmul.f32.gmra.mxu0 %v1285
        %v1304 = vpop.f32.mrf.mxu0
        %v1305 = vadd.f32 0.0, %v1304
        %1306 = vdwg.mxu0
        %1307 = vmatpush.msra.mxu0 %v1082
        %1308 = vmatpush.msra.mxu0 %v1081
        %1309 = vmatpush.msra.mxu0 %v1080
        %1310 = vmatpush.msra.mxu0 %v1079
        %1311 = vmatpush.msra.mxu0 %v1078
        %1312 = vmatpush.msra.mxu0 %v1077
        %1313 = vmatpush.msra.mxu0 %v1076
        %1314 = vmatpush.msra.mxu0 %v1075
        %1315 = vmatpush.msra.mxu0 %v1074
        %1316 = vmatpush.msra.mxu0 %v1073
        %1317 = vmatpush.msra.mxu0 %v1072
        %1318 = vmatpush.msra.mxu0 %v1071
        %1319 = vmatpush.msra.mxu0 %v1070
        %1320 = vmatpush.msra.mxu0 %v1069
        %1321 = vmatpush.msra.mxu0 %v1068
        %1322 = vmatpush.msra.mxu0 %v1067
        %1323 = vmatmul.f32.gmra.mxu0 %v1286
        %v1324 = vpop.f32.mrf.mxu0
        %v1325 = vadd.f32 %v1305, %v1324
        %1326 = vdwg.mxu0
        %v1327 = vadd.f32 %v1325, %v1115
        %v1329 = vsel %vm1117, %v1327, 0
        %1331 = vmatpush.xpose.msra.mxu0 %v1167
        %1332 = vmatpush.xpose.msra.mxu0 %v1164
        %1333 = vmatpush.xpose.msra.mxu0 %v1161
        %1334 = vmatpush.xpose.msra.mxu0 %v1158
        %1335 = vmatpush.xpose.msra.mxu0 %v1155
        %1336 = vmatpush.xpose.msra.mxu0 %v1152
        %1337 = vmatpush.xpose.msra.mxu0 %v1149
        %1338 = vmatpush.xpose.msra.mxu0 %v1146
        %1339 = vmatpush.xpose.msra.mxu0 %v1143
        %1340 = vmatpush.xpose.msra.mxu0 %v1140
        %1341 = vmatpush.xpose.msra.mxu0 %v1137
        %1342 = vmatpush.xpose.msra.mxu0 %v1134
        %1343 = vmatpush.xpose.msra.mxu0 %v1131
        %1344 = vmatpush.xpose.msra.mxu0 %v1128
        %1345 = vmatpush.xpose.msra.mxu0 %v1125
        %1346 = vmatpush.xpose.msra.mxu0 %v1122
        %1347 = vmatmul.f32.gmra.mxu0 %v1329
        %v1348 = vpop.f32.mrf.mxu0
        %v1349 = vadd.f32 0.0, %v1348
        %1350 = vdwg.mxu0
        %1351 = vmatpush.xpose.msra.mxu0 %v1215
        %1352 = vmatpush.xpose.msra.mxu0 %v1212
        %1353 = vmatpush.xpose.msra.mxu0 %v1209
        %1354 = vmatpush.xpose.msra.mxu0 %v1206
        %1355 = vmatpush.xpose.msra.mxu0 %v1203
        %1356 = vmatpush.xpose.msra.mxu0 %v1200
        %1357 = vmatpush.xpose.msra.mxu0 %v1197
        %1358 = vmatpush.xpose.msra.mxu0 %v1194
        %1359 = vmatpush.xpose.msra.mxu0 %v1191
        %1360 = vmatpush.xpose.msra.mxu0 %v1188
        %1361 = vmatpush.xpose.msra.mxu0 %v1185
        %1362 = vmatpush.xpose.msra.mxu0 %v1182
        %1363 = vmatpush.xpose.msra.mxu0 %v1179
        %1364 = vmatpush.xpose.msra.mxu0 %v1176
        %1365 = vmatpush.xpose.msra.mxu0 %v1173
        %1366 = vmatpush.xpose.msra.mxu0 %v1170
        %1367 = vmatmul.f32.gmra.mxu0 %v1329
        %v1368 = vpop.f32.mrf.mxu0
        %v1369 = vadd.f32 0.0, %v1368
        %1370 = vdwg.mxu0
        %v1371 = vmul.f32 %v1349, 0.17677669
        %v1372 = vmul.f32 %v1369, 0.17677669
        %v1373 = vmax.f32 %v1371, %v1372
        %1374 = vmax.xlane.f32.xlu0 %v1373
        %v1375 = vpop.xlane.xlu0 %1374
        %v1376 = vsub.f32 %v1371, %v1375
        %v1377 = vsub.f32 %v1372, %v1375
        %v1378 = vmul.f32 %v1376, 1.442695
        %v1379 = vpow.pop %v1378
        %v1380 = vmul.f32 %v1377, 1.442695
        %v1381 = vpow.pop %v1380
        %v1382 = vadd.f32 %v1379, %v1381
        %1383 = vadd.xlane.f32.xlu0 %v1382
        %v1384 = vpop.xlane.xlu0 %1383
        %v1385 = vrcp.pop %v1384
        %v1386 = vmul.f32 %v1384, %v1385
        %v1387 = vsub.f32 1.0, %v1386
        %v1388 = vmul.f32 %v1385, %v1387
        %v1389 = vadd.f32 %v1385, %v1388
        %vm1390 = vweird.f32 %v1384
        %vm1391 = vweird.f32 %v1385
        %vm1392 = vmor %vm1390, %vm1391
        %v1393 = vsel %vm1392, %v1385, %v1389
        %v1394 = vand.u32 2147483647, %v1384
        %vm1395 = vcmp.eq.f32.partialorder %v1394, 8.507059e+37
        %v1396 = vand.u32 %v1384, 2147483648
        %v1397 = vor.u32 1.1754944e-38, %v1396
        %v1398 = vsel %vm1395, %v1397, %v1393
        %v1399 = vmul.f32 %v1379, %v1398
        %v1400 = vmul.f32 %v1381, %v1398
        %1401 = vmatpush.msra.mxu0 %v1066
        %1402 = vmatpush.msra.mxu0 %v1065
        %1403 = vmatpush.msra.mxu0 %v1064
        %1404 = vmatpush.msra.mxu0 %v1063
        %1405 = vmatpush.msra.mxu0 %v1062
        %1406 = vmatpush.msra.mxu0 %v1061
        %1407 = vmatpush.msra.mxu0 %v1060
        %1408 = vmatpush.msra.mxu0 %v1059
        %1409 = vmatpush.msra.mxu0 %v1058
        %1410 = vmatpush.msra.mxu0 %v1057
        %1411 = vmatpush.msra.mxu0 %v1056
        %1412 = vmatpush.msra.mxu0 %v1055
        %1413 = vmatpush.msra.mxu0 %v1054
        %1414 = vmatpush.msra.mxu0 %v1053
        %1415 = vmatpush.msra.mxu0 %v1052
        %1416 = vmatpush.msra.mxu0 %v1051
        %1417 = vmatmul.f32.gmra.mxu0 %v1399
        %v1418 = vpop.f32.mrf.mxu0
        %v1419 = vadd.f32 0.0, %v1418
        %1420 = vdwg.mxu0
        %1421 = vmatpush.msra.mxu0 %v1082
        %1422 = vmatpush.msra.mxu0 %v1081
        %1423 = vmatpush.msra.mxu0 %v1080
        %1424 = vmatpush.msra.mxu0 %v1079
        %1425 = vmatpush.msra.mxu0 %v1078
        %1426 = vmatpush.msra.mxu0 %v1077
        %1427 = vmatpush.msra.mxu0 %v1076
        %1428 = vmatpush.msra.mxu0 %v1075
        %1429 = vmatpush.msra.mxu0 %v1074
        %1430 = vmatpush.msra.mxu0 %v1073
        %1431 = vmatpush.msra.mxu0 %v1072
        %1432 = vmatpush.msra.mxu0 %v1071
        %1433 = vmatpush.msra.mxu0 %v1070
        %1434 = vmatpush.msra.mxu0 %v1069
        %1435 = vmatpush.msra.mxu0 %v1068
        %1436 = vmatpush.msra.mxu0 %v1067
        %1437 = vmatmul.f32.gmra.mxu0 %v1400
        %v1438 = vpop.f32.mrf.mxu0
        %v1439 = vadd.f32 %v1419, %v1438
        %1440 = vdwg.mxu0
        %v1441 = vadd.f32 %v1325, %v1439
        %v1442 = vld [vmem:[%s5] sm:$0xff]
        %v1443 = vld [vmem:[%s5 + $0x8] sm:$0xff]
        %v1444 = vld [vmem:[%s5 + $0x10] sm:$0xff]
        %v1445 = vld [vmem:[%s5 + $0x18] sm:$0xff]
        %v1446 = vld [vmem:[%s6] sm:$0x1]
        %v1448 = vperm.slane %v1446, 0
        %v1451 = vsel %vm1117, %v1325, 0
        %v1454 = vsel %vm1117, %v1441, 0
        %1456 = vmatpush.msra.mxu0 0.0
        %1457 = vmatpush.msra.mxu0 0.0
        %1458 = vmatpush.msra.mxu0 0.0
        %1459 = vmatpush.msra.mxu0 0.0
        %1460 = vmatpush.msra.mxu0 0.0
        %1461 = vmatpush.msra.mxu0 0.0
        %1462 = vmatpush.msra.mxu0 0.0
        %1463 = vmatpush.msra.mxu0 0.0
        %1464 = vmatpush.msra.mxu0 0.0
        %1465 = vmatpush.msra.mxu0 0.0
        %1466 = vmatpush.msra.mxu0 0.0
        %1467 = vmatpush.msra.mxu0 0.0
        %1468 = vmatpush.msra.mxu0 %v1445
        %1469 = vmatpush.msra.mxu0 %v1444
        %1470 = vmatpush.msra.mxu0 %v1443
        %1471 = vmatpush.msra.mxu0 %v1442
        %1472 = vmatmul.f32.gmra.mxu0 %v1451
        %v1473 = vpop.f32.mrf.mxu0
        %v1474 = vadd.f32 %v1448, %v1473
        %1475 = vmatmul.f32.gmra.mxu0 %v1454
        %v1476 = vpop.f32.mrf.mxu0
        %v1477 = vadd.f32 %v1448, %v1476
        %1478 = vdwg.mxu0
        %v1479 = vmax.f32 %v1474, 0.0
        %v1480 = vmax.f32 %v1477, 0.0
        %v1481 = vld [vmem:[%s7] sm:$0xff]
        %v1482 = vld [vmem:[%s7 + $0x8] sm:$0xff]
        %v1483 = vld [vmem:[%s7 + $0x10] sm:$0xff]
        %v1484 = vld [vmem:[%s7 + $0x18] sm:$0xff]
        %v1485 = vld [vmem:[%s7 + $0x20] sm:$0xff]
        %v1486 = vld [vmem:[%s7 + $0x28] sm:$0xff]
        %v1487 = vld [vmem:[%s7 + $0x30] sm:$0xff]
        %v1488 = vld [vmem:[%s7 + $0x38] sm:$0xff]
        %v1489 = vld [vmem:[%s8] sm:$0x1]
        %v1491 = vperm.slane %v1489, 0
        %1495 = vrot.lane.b32.xlu0 %v1479, 112
        %v1496 = vpop.permute.xlu0 %1495
        %1497 = vrot.lane.b32.xlu0 %v1480, 112
        %v1498 = vpop.permute.xlu0 %1497
        %vm1499 = vcmask 523264
        %v1500 = vsel %vm1499, %v1496, 0
        %v1502 = vsel %vm1499, %v1498, 0
        %1504 = vmatpush.msra.mxu0 0.0
        %1505 = vmatpush.msra.mxu0 0.0
        %1506 = vmatpush.msra.mxu0 0.0
        %1507 = vmatpush.msra.mxu0 0.0
        %1508 = vmatpush.msra.mxu0 0.0
        %1509 = vmatpush.msra.mxu0 0.0
        %1510 = vmatpush.msra.mxu0 0.0
        %1511 = vmatpush.msra.mxu0 0.0
        %1512 = vmatpush.msra.mxu0 %v1488
        %1513 = vmatpush.msra.mxu0 %v1487
        %1514 = vmatpush.msra.mxu0 %v1486
        %1515 = vmatpush.msra.mxu0 %v1485
        %1516 = vmatpush.msra.mxu0 %v1484
        %1517 = vmatpush.msra.mxu0 %v1483
        %1518 = vmatpush.msra.mxu0 %v1482
        %1519 = vmatpush.msra.mxu0 %v1481
        %1520 = vmatmul.f32.gmra.mxu0 %v1500
        %v1521 = vpop.f32.mrf.mxu0
        %v1522 = vadd.f32 %v1491, %v1521
        %1523 = vmatmul.f32.gmra.mxu0 %v1502
        %v1524 = vpop.f32.mrf.mxu0
        %v1525 = vadd.f32 %v1491, %v1524
        %1526 = vdwg.mxu0
        %v1527 = vmax.f32 %v1522, 0.0
        %v1528 = vmax.f32 %v1525, 0.0
        %v1529 = vld [vmem:[%s9] sm:$0xff]
        %v1530 = vld [vmem:[%s9 + $0x8] sm:$0xff]
        %v1531 = vld [vmem:[%s9 + $0x10] sm:$0xff]
        %v1532 = vld [vmem:[%s9 + $0x18] sm:$0xff]
        %v1533 = vld [vmem:[%s9 + $0x20] sm:$0xff]
        %v1534 = vld [vmem:[%s9 + $0x28] sm:$0xff]
        %v1535 = vld [vmem:[%s9 + $0x30] sm:$0xff]
        %v1536 = vld [vmem:[%s9 + $0x38] sm:$0xff]
        %v1537 = vld [vmem:[%s10] sm:$0x1]
        %v1539 = vperm.slane %v1537, 0
        %v1542 = vsel %vm1499, %v1527, 0
        %v1545 = vsel %vm1499, %v1528, 0
        %1547 = vmatpush.msra.mxu0 0.0
        %1548 = vmatpush.msra.mxu0 0.0
        %1549 = vmatpush.msra.mxu0 0.0
        %1550 = vmatpush.msra.mxu0 0.0
        %1551 = vmatpush.msra.mxu0 0.0
        %1552 = vmatpush.msra.mxu0 0.0
        %1553 = vmatpush.msra.mxu0 0.0
        %1554 = vmatpush.msra.mxu0 0.0
        %1555 = vmatpush.msra.mxu0 %v1536
        %1556 = vmatpush.msra.mxu0 %v1535
        %1557 = vmatpush.msra.mxu0 %v1534
        %1558 = vmatpush.msra.mxu0 %v1533
        %1559 = vmatpush.msra.mxu0 %v1532
        %1560 = vmatpush.msra.mxu0 %v1531
        %1561 = vmatpush.msra.mxu0 %v1530
        %1562 = vmatpush.msra.mxu0 %v1529
        %1563 = vmatmul.f32.gmra.mxu0 %v1542
        %v1564 = vpop.f32.mrf.mxu0
        %v1565 = vadd.f32 %v1539, %v1564
        %1566 = vmatmul.f32.gmra.mxu0 %v1545
        %v1567 = vpop.f32.mrf.mxu0
        %v1568 = vadd.f32 %v1539, %v1567
        %1569 = vdwg.mxu0
        %v1570 = vxor.u32 %v1565, 2147483648
        %v1571 = vxor.u32 %v1568, 2147483648
        %v1572 = vmul.f32 %v1570, 1.442695
        %v1573 = vpow.pop %v1572
        %v1574 = vmul.f32 %v1571, 1.442695
        %v1575 = vpow.pop %v1574
        %v1576 = vadd.f32 %v1573, 1.0
        %v1577 = vadd.f32 %v1575, 1.0
        %v1578 = vrcp.pop %v1576
        %v1579 = vmul.f32 %v1576, %v1578
        %v1580 = vsub.f32 1.0, %v1579
        %v1581 = vmul.f32 %v1578, %v1580
        %v1582 = vadd.f32 %v1578, %v1581
        %vm1583 = vweird.f32 %v1576
        %vm1584 = vweird.f32 %v1578
        %vm1585 = vmor %vm1583, %vm1584
        %v1586 = vsel %vm1585, %v1578, %v1582
        %v1587 = vand.u32 2147483647, %v1576
        %vm1588 = vcmp.eq.f32.partialorder %v1587, 8.507059e+37
        %v1589 = vand.u32 %v1576, 2147483648
        %v1590 = vor.u32 1.1754944e-38, %v1589
        %v1591 = vsel %vm1588, %v1590, %v1586
        %v1592 = vmul.f32 1.0, %v1591
        %v1593 = vrcp.pop %v1577
        %v1594 = vmul.f32 %v1577, %v1593
        %v1595 = vsub.f32 1.0, %v1594
        %v1596 = vmul.f32 %v1593, %v1595
        %v1597 = vadd.f32 %v1593, %v1596
        %vm1598 = vweird.f32 %v1577
        %vm1599 = vweird.f32 %v1593
        %vm1600 = vmor %vm1598, %vm1599
        %v1601 = vsel %vm1600, %v1593, %v1597
        %v1602 = vand.u32 2147483647, %v1577
        %vm1603 = vcmp.eq.f32.partialorder %v1602, 8.507059e+37
        %v1604 = vand.u32 %v1577, 2147483648
        %v1605 = vor.u32 1.1754944e-38, %v1604
        %v1606 = vsel %vm1603, %v1605, %v1601
        %v1607 = vmul.f32 1.0, %v1606
        %1610 = vrot.lane.b32.xlu0 %v1592, 16
        %v1611 = vpop.permute.xlu0 %1610
        %1612 = vrot.lane.b32.xlu0 %v1607, 16
        %v1613 = vpop.permute.xlu0 %1612
        %vm1616 = vcmask 130048
        %v1617 = vsel %vm1616, %v1474, %v1611
        %v1618 = vsel %vm1616, %v1477, %v1613
        %vm1619 = vcmask 195584
        %1620 = vst.msk [vmem:[%s390] sm:$0xff] %vm1619, %v1617
        %s1621 = scalar_lea.vmem %s390, 8 [#allocation2]
        %1622 = vst.msk [vmem:[%s1621] sm:$0xff] %vm1619, %v1618
        %s1623 = sand.u32 %s271, 1
        %s1624 = sand.u32 %s271, 1
        %s1625 = smul.addr %s1624, 16
        %s1626 = scalar_lea.vmem [#allocation2], %s1625
        // Predicated region
        $region65: #{detrhoi_forward.1} parent=63 // pred_check
          %p1627 = pneg %p281
        $region66: #{detrhoi_forward.1} parent=63 // pred_check_branch
          %1629 = sbr.rel (%p1627) target = $region68
        $region67: #{detrhoi_forward.1} parent=63 // pred_region
          %s1630 = smul.addr %s22, 8
          %s1631 = scalar_lea.vmem %s11, %s1630
          // Predicated region
          $region69: #{detrhoi_forward.1} parent=67 // pred_check
            _
          $region70: #{detrhoi_forward.1} parent=67 // pred_check_branch
            %1633 = sbr.rel (0) target = $region72
          $region71: #{detrhoi_forward.1} parent=67 // pred_region
            // Predicated region
            $region73: #{detrhoi_forward.1} parent=71 // pred_check
              _
            $region74: #{detrhoi_forward.1} parent=71 // pred_check_branch
              %1635 = sbr.rel (0) target = $region76
            $region75: #{detrhoi_forward.1} parent=71 // pred_region
              // Predicated region
              $region88: #{detrhoi_forward.1} parent=75 // pred_check
                _
              $region89: #{detrhoi_forward.1} parent=75 // pred_check_branch
                %1653 = sbr.rel (0) target = $region91
              $region90: #{detrhoi_forward.1} parent=75 // pred_region
                loop: start=0, step=1, limit=1
                $region92: #{detrhoi_forward.1} parent=90 // loop_pre_header
                  _
                $region93: #{detrhoi_forward.1} parent=90 // loop_header
                  %s1655 = sphi 0, %s1659
                  %p1656 = scmp.ge.s32.totalorder %s1655, 1
                  %s1660 = sphi %s1626, %s1626
                  %s1661 = sphi %s1631, %s1631
                $region94: #{detrhoi_forward.1} parent=90 // loop_header_branch
                  %1658 = sbr.rel (%p1656) target = $region98
                $region95: #{detrhoi_forward.1} parent=90 // loop_body
                  %v1662 = vld [vmem:[%s1660] sm:$0xff]
                  %1663 = vst [vmem:[%s1661] sm:$0xff] %v1662
                  %v1664 = vld [vmem:[%s1660 + $0x8] sm:$0xff]
                  %1665 = vst [vmem:[%s1661 + $0x10] sm:$0xff] %v1664
                $region96: #{detrhoi_forward.1} parent=90 // loop_footer
                  %s1659 = sadd.s32 1, %s1655
                $region97: #{detrhoi_forward.1} parent=90 // loop_footer_branch
                  %1654 = sbr.rel target = $region93
                $region98: #{detrhoi_forward.1} parent=90 // loop_exit
                  _
              $region91: #{detrhoi_forward.1} parent=75 // pred_fallthru
                _
              // Predicated region
              $region99: #{detrhoi_forward.1} parent=75 // pred_check
                _
              $region100: #{detrhoi_forward.1} parent=75 // pred_check_branch
                %1667 = sbr.rel target = $region102
              $region101: #{detrhoi_forward.1} parent=75 // pred_region
                _
              $region102: #{detrhoi_forward.1} parent=75 // pred_fallthru
                _
            $region76: #{detrhoi_forward.1} parent=71 // pred_fallthru
              _
            // Predicated region
            $region77: #{detrhoi_forward.1} parent=71 // pred_check
              _
            $region78: #{detrhoi_forward.1} parent=71 // pred_check_branch
              %1637 = sbr.rel target = $region80
            $region79: #{detrhoi_forward.1} parent=71 // pred_region
              %s1639 = ssub.s32 256, 1
              loop: start=0, step=1, limit=1
              $region81: #{detrhoi_forward.1} parent=79 // loop_pre_header
                _
              $region82: #{detrhoi_forward.1} parent=79 // loop_header
                %s1641 = sphi 0, %s1645
                %p1642 = scmp.ge.s32.totalorder %s1641, 1
                %s1646 = sphi %s1626, %s1626
                %s1647 = sphi %s1631, %s1631
              $region83: #{detrhoi_forward.1} parent=79 // loop_header_branch
                %1644 = sbr.rel (%p1642) target = $region87
              $region84: #{detrhoi_forward.1} parent=79 // loop_body
                %v1648 = vld [vmem:[%s1646] sm:%s1639]
                %1649 = vst [vmem:[%s1647] sm:%s1639] %v1648
                %v1650 = vld [vmem:[%s1646 + $0x8] sm:%s1639]
                %1651 = vst [vmem:[%s1647 + $0x10] sm:%s1639] %v1650
              $region85: #{detrhoi_forward.1} parent=79 // loop_footer
                %s1645 = sadd.s32 1, %s1641
              $region86: #{detrhoi_forward.1} parent=79 // loop_footer_branch
                %1640 = sbr.rel target = $region82
              $region87: #{detrhoi_forward.1} parent=79 // loop_exit
                _
            $region80: #{detrhoi_forward.1} parent=71 // pred_fallthru
              _
          $region72: #{detrhoi_forward.1} parent=67 // pred_fallthru
            _
          %1668 = vnop
        $region68: #{detrhoi_forward.1} parent=63 // pred_fallthru
          _
      $region64: #{detrhoi_forward.1} parent=5 // pred_fallthru
        _
      %p1669 = scmp.le.s32.totalorder 2, %s17
      // Predicated region
      $region103: #{detrhoi_forward.1} parent=5 // pred_check
        %p1670 = pneg %p1669
      $region104: #{detrhoi_forward.1} parent=5 // pred_check_branch
        %1672 = sbr.rel (%p1670) target = $region106
      $region105: #{detrhoi_forward.1} parent=5 // pred_region
        %s1673 = ssub.s32 %s17, 2
        // Predicated region
        $region107: #{detrhoi_forward.1} parent=105 // pred_check
          %p1674 = pneg %p287
        $region108: #{detrhoi_forward.1} parent=105 // pred_check_branch
          %1676 = sbr.rel (%p1674) target = $region110
        $region109: #{detrhoi_forward.1} parent=105 // pred_region
          %s1677 = sand.u32 %s272, 1
          %s1678 = sand.u32 %s272, 1
          %s1679 = smul.addr %s1678, 16
          %s1680 = scalar_lea.vmem [#allocation2], %s1679
        $region110: #{detrhoi_forward.1} parent=105 // pred_fallthru
          _
      $region106: #{detrhoi_forward.1} parent=5 // pred_fallthru
        _
    $region6: #{detrhoi_forward.1} parent=1 // loop_footer
      %s21 = sadd.s32 1, %s17
    $region7: #{detrhoi_forward.1} parent=1 // loop_footer_branch
      %16 = sbr.rel target = $region3
    $region8: #{detrhoi_forward.1} parent=1 // loop_exit
      _

</llo_original>
